<compile_context>
chip_gen: v7x
topology: tpu7x:2x2x1
jax: 0.10.0
libtpu: 0.0.40
codegen_flags: <defaults>
</compile_context>

<pallas_src>
import functools

import jax
import jax.numpy as jnp
from jax import lax
from jax.experimental import pallas as pl
from jax.experimental.pallas import tpu as pltpu

BN_EPS = 1e-5  # PyTorch BatchNorm1d default eps


def _bn_train(x, gamma, beta):
    # nn.BatchNorm1d training mode: batch statistics, biased variance.
    mean = jnp.mean(x, axis=0, keepdims=True)
    var = jnp.mean((x - mean) ** 2, axis=0, keepdims=True)
    return (x - mean) * lax.rsqrt(var + BN_EPS) * gamma + beta


def barlow_fused_kernel(x_ref, min_ref, m2_ref,
                        w1_ref, w2_ref, w3_ref,
                        g1_ref, b1_ref, g2_ref, b2_ref,
                        o1_ref, o2_ref, loss_ref,
                        *, lambd, inv_batch_size):
    n = o1_ref.shape[0]

    # x_ref holds [f1; f2] stacked along batch; min_ref is the pre-scaled
    # dropout mask for the f1 rows and all-ones for the f2 rows.
    x = x_ref[...] * min_ref[...]                       # (2n, 1024) bf16

    g1 = g1_ref[...]
    b1 = b1_ref[...]
    g2 = g2_ref[...]
    b2 = b2_ref[...]

    def bn_relu_per_branch(h, gamma, beta):
        # The PyTorch module calls projector() separately per branch, so the
        # BatchNorm statistics must be computed per branch.
        h1 = jnp.maximum(_bn_train(h[:n], gamma, beta), 0.0)
        h2 = jnp.maximum(_bn_train(h[n:], gamma, beta), 0.0)
        return jnp.concatenate([h1, h2], axis=0)        # (2n, D) f32

    # Layer 1: Linear(1024, D, bias=False) -> BN -> ReLU (one MXU pass, both branches)
    h = jnp.dot(x, w1_ref[...], preferred_element_type=jnp.float32)
    h = bn_relu_per_branch(h, g1, b1).astype(jnp.bfloat16)
    # Layer 2: Linear(D, D, bias=False) -> BN -> ReLU
    h = jnp.dot(h, w2_ref[...], preferred_element_type=jnp.float32)
    h = bn_relu_per_branch(h, g2, b2).astype(jnp.bfloat16)
    # Layer 3: Linear(D, D, bias=False)
    z = jnp.dot(h, w3_ref[...], preferred_element_type=jnp.float32)  # (2n, D) f32

    o1 = z[:n]                                          # branch 1: dropout was on the input
    o2 = z[n:] * m2_ref[...]                            # branch 2: dropout after projector
    o1_ref[...] = o1
    o2_ref[...] = o2

    # ------------- Barlow-Twins loss (fused) -------------
    def bn_no_affine(v):                                # nn.BatchNorm1d(D, affine=False), train
        mean = jnp.mean(v, axis=0, keepdims=True)
        var = jnp.mean((v - mean) ** 2, axis=0, keepdims=True)
        return (v - mean) * lax.rsqrt(var + BN_EPS)

    z1 = bn_no_affine(o1)
    z2 = bn_no_affine(o2)

    # c = bn(o1).T @ bn(o2) / batch_size, without an explicit transpose:
    # contract both operands over the batch axis.
    c = lax.dot_general(z1, z2,
                        dimension_numbers=(((0,), (0,)), ((), ())),
                        preferred_element_type=jnp.float32) * inv_batch_size

    d = c.shape[0]
    row = lax.broadcasted_iota(jnp.int32, (d, d), 0)
    col = lax.broadcasted_iota(jnp.int32, (d, d), 1)
    c_diag = jnp.where(row == col, c, 0.0)              # single mask / single where
    diag_sum = jnp.sum(c_diag)
    diag_sq = jnp.sum(c_diag * c_diag)
    total_sq = jnp.sum(c * c)
    on_diag = diag_sq - 2.0 * diag_sum + float(d)       # sum((c_ii - 1)^2)
    off_diag = total_sq - diag_sq                       # sum_{i != j} c_ij^2
    loss = on_diag + lambd * off_diag

    # Lane-dense (1, 128) output slab: broadcast the scalar so the store is unmasked.
    loss_ref[...] = jnp.broadcast_to(loss, loss_ref.shape).astype(jnp.float32)


def barlow_twins_forward_and_loss(f1, f2, mask1, mask2,
                                  w1, w2, w3, g1, b1, g2, b2,
                                  *, lambd, batch_size):
    """Returns (output_1, output_2, loss) matching the module's forward + loss."""
    n, in_dim = f1.shape
    d = w1.shape[1]

    # Stack the two views so the shared Linear layers run as one MXU pass each.
    # Branch-1 rows carry the pre-scaled dropout mask; branch-2 rows carry ones
    # (branch-2 dropout is applied after the projector, inside the kernel).
    x_cat = jnp.concatenate([f1, f2], axis=0).astype(jnp.bfloat16)          # (2n, 1024)
    m_in = jnp.concatenate([mask1, jnp.ones_like(mask1)], axis=0).astype(jnp.bfloat16)

    vmem = pl.BlockSpec(memory_space=pltpu.MemorySpace.VMEM)
    kernel = functools.partial(barlow_fused_kernel,
                               lambd=float(lambd),
                               inv_batch_size=1.0 / float(batch_size))

    o1, o2, loss_slab = pl.pallas_call(
        kernel,
        out_shape=(jax.ShapeDtypeStruct((n, d), jnp.float32),
                   jax.ShapeDtypeStruct((n, d), jnp.float32),
                   jax.ShapeDtypeStruct((1, 128), jnp.float32)),
        in_specs=[vmem] * 10,
        out_specs=(vmem, vmem, vmem),
    )(x_cat, m_in, mask2.astype(jnp.float32),
      w1.astype(jnp.bfloat16), w2.astype(jnp.bfloat16), w3.astype(jnp.bfloat16),
      g1, b1, g2, b2)
    return o1, o2, loss_slab[0, 0]


def reference_forward_and_loss(f1, f2, mask1, mask2,
                               w1, w2, w3, g1, b1, g2, b2,
                               *, lambd, batch_size):
    """Pure-JAX reference mirroring the PyTorch module (same bf16 matmul math)."""
    def bn(x, gamma, beta):
        mean = x.mean(0, keepdims=True)
        var = ((x - mean) ** 2).mean(0, keepdims=True)
        return (x - mean) * lax.rsqrt(var + BN_EPS) * gamma + beta

    def projector(x_bf16):
        h = jnp.dot(x_bf16, w1.astype(jnp.bfloat16), preferred_element_type=jnp.float32)
        h = jnp.maximum(bn(h, g1, b1), 0.0)
        h = jnp.dot(h.astype(jnp.bfloat16), w2.astype(jnp.bfloat16),
                    preferred_element_type=jnp.float32)
        h = jnp.maximum(bn(h, g2, b2), 0.0)
        return jnp.dot(h.astype(jnp.bfloat16), w3.astype(jnp.bfloat16),
                       preferred_element_type=jnp.float32)

    o1 = projector((f1.astype(jnp.bfloat16) * mask1.astype(jnp.bfloat16)))
    o2 = projector(f2.astype(jnp.bfloat16)) * mask2

    def bn_na(v):
        mean = v.mean(0, keepdims=True)
        var = ((v - mean) ** 2).mean(0, keepdims=True)
        return (v - mean) * lax.rsqrt(var + BN_EPS)

    c = (bn_na(o1).T @ bn_na(o2)) / float(batch_size)
    diag = jnp.diag(c)
    on_diag = jnp.sum((diag - 1.0) ** 2)
    off_diag = jnp.sum(c ** 2) - jnp.sum(diag ** 2)
    return o1, o2, on_diag + float(lambd) * off_diag


if __name__ == "__main__":
    # Small shapes consistent with the module: projector input dim is the
    # hard-coded 1024 (flattened extract_features); output_size=128, batch=8.
    N, IN, D = 8, 1024, 128
    LAMBD = 0.005

    key = jax.random.PRNGKey(0)
    kf1, kf2, kw1, kw2, kw3, km1, km2 = jax.random.split(key, 7)

    feat_1 = jax.random.normal(kf1, (N, IN), jnp.float32)   # flattened extract_features, view 1
    feat_2 = jax.random.normal(kf2, (N, IN), jnp.float32)   # flattened extract_features, view 2

    # Deterministic synthetic parameters (projector Linears have no biases).
    w1 = jax.random.normal(kw1, (IN, D), jnp.float32) / jnp.sqrt(IN)
    w2 = jax.random.normal(kw2, (D, D), jnp.float32) / jnp.sqrt(D)
    w3 = jax.random.normal(kw3, (D, D), jnp.float32) / jnp.sqrt(D)
    g1 = jnp.ones((1, D), jnp.float32)    # BatchNorm1d affine params (init gamma=1, beta=0)
    b1 = jnp.zeros((1, D), jnp.float32)
    g2 = jnp.ones((1, D), jnp.float32)
    b2 = jnp.zeros((1, D), jnp.float32)

    # nn.Dropout(0.5) training masks, pre-scaled by 1/(1-p) = 2 (keep -> 2, drop -> 0).
    mask1 = jax.random.bernoulli(km1, 0.5, (N, IN)).astype(jnp.float32) * 2.0
    mask2 = jax.random.bernoulli(km2, 0.5, (N, D)).astype(jnp.float32) * 2.0

    out_1, out_2, loss = barlow_twins_forward_and_loss(
        feat_1, feat_2, mask1, mask2, w1, w2, w3, g1, b1, g2, b2,
        lambd=LAMBD, batch_size=N)
    jax.block_until_ready((out_1, out_2, loss))

    ref_1, ref_2, ref_loss = reference_forward_and_loss(
        feat_1, feat_2, mask1, mask2, w1, w2, w3, g1, b1, g2, b2,
        lambd=LAMBD, batch_size=N)

    assert out_1.shape == (N, D) and out_2.shape == (N, D)
    assert bool(jnp.isfinite(loss))
    assert bool(jnp.allclose(out_1, ref_1, rtol=2e-2, atol=2e-2))
    assert bool(jnp.allclose(out_2, ref_2, rtol=2e-2, atol=2e-2))
    assert bool(jnp.allclose(loss, ref_loss, rtol=2e-2, atol=2e-2))
    print("KERNEL_OK")
</pallas_src>

<mosaic_0001>
module attributes {stable_mosaic.version = 11 : i64} {
  func.func @barlow_fused_kernel(%arg0: memref<16x1024xbf16, #tpu.memory_space<vmem>>, %arg1: memref<16x1024xbf16, #tpu.memory_space<vmem>>, %arg2: memref<8x128xf32, #tpu.memory_space<vmem>>, %arg3: memref<1024x128xbf16, #tpu.memory_space<vmem>>, %arg4: memref<128x128xbf16, #tpu.memory_space<vmem>>, %arg5: memref<128x128xbf16, #tpu.memory_space<vmem>>, %arg6: memref<1x128xf32, #tpu.memory_space<vmem>>, %arg7: memref<1x128xf32, #tpu.memory_space<vmem>>, %arg8: memref<1x128xf32, #tpu.memory_space<vmem>>, %arg9: memref<1x128xf32, #tpu.memory_space<vmem>>, %arg10: memref<8x128xf32, #tpu.memory_space<vmem>>, %arg11: memref<8x128xf32, #tpu.memory_space<vmem>>, %arg12: memref<1x128xf32, #tpu.memory_space<vmem>>) attributes {dimension_semantics = [], scalar_prefetch = 0 : i64, scratch_operands = 0 : i64, tpu.core_type = #tpu.core_type<tc>} {
    %c0 = arith.constant 0 : index
    %c0_0 = arith.constant 0 : index
    %0 = vector.load %arg0[%c0, %c0_0] : memref<16x1024xbf16, #tpu.memory_space<vmem>>, vector<16x1024xbf16>
    %c0_1 = arith.constant 0 : index
    %c0_2 = arith.constant 0 : index
    %1 = vector.load %arg1[%c0_1, %c0_2] : memref<16x1024xbf16, #tpu.memory_space<vmem>>, vector<16x1024xbf16>
    %2 = arith.mulf %0, %1 : vector<16x1024xbf16>
    %c0_3 = arith.constant 0 : index
    %c0_4 = arith.constant 0 : index
    %3 = vector.load %arg6[%c0_3, %c0_4] : memref<1x128xf32, #tpu.memory_space<vmem>>, vector<1x128xf32>
    %c0_5 = arith.constant 0 : index
    %c0_6 = arith.constant 0 : index
    %4 = vector.load %arg7[%c0_5, %c0_6] : memref<1x128xf32, #tpu.memory_space<vmem>>, vector<1x128xf32>
    %c0_7 = arith.constant 0 : index
    %c0_8 = arith.constant 0 : index
    %5 = vector.load %arg8[%c0_7, %c0_8] : memref<1x128xf32, #tpu.memory_space<vmem>>, vector<1x128xf32>
    %c0_9 = arith.constant 0 : index
    %c0_10 = arith.constant 0 : index
    %6 = vector.load %arg9[%c0_9, %c0_10] : memref<1x128xf32, #tpu.memory_space<vmem>>, vector<1x128xf32>
    %c0_11 = arith.constant 0 : index
    %c0_12 = arith.constant 0 : index
    %7 = vector.load %arg3[%c0_11, %c0_12] : memref<1024x128xbf16, #tpu.memory_space<vmem>>, vector<1024x128xbf16>
    %cst = arith.constant dense<0.000000e+00> : vector<16x128xf32>
    %8 = tpu.matmul %2, %7, %cst {dimension_numbers = #tpu.dot_dimension_numbers<[1], [0], [0], [1], [0, 0, 1, 1], [], []>} : vector<16x1024xbf16>, vector<1024x128xbf16>, vector<16x128xf32> -> vector<16x128xf32>
    %9 = vector.extract_strided_slice %8 {offsets = [0, 0], sizes = [8, 128], strides = [1, 1]} : vector<16x128xf32> to vector<8x128xf32>
    %cst_13 = arith.constant dense<0.000000e+00> : vector<128xf32>
    %10 = vector.multi_reduction <add>, %9, %cst_13 [0] : vector<8x128xf32> to vector<128xf32>
    %11 = vector.shape_cast %10 : vector<128xf32> to vector<1x128xf32>
    %cst_14 = arith.constant 8.000000e+00 : f32
    %12 = vector.broadcast %cst_14 : f32 to vector<1x128xf32>
    %13 = arith.divf %11, %12 : vector<1x128xf32>
    %14 = vector.broadcast %13 : vector<1x128xf32> to vector<8x128xf32>
    %15 = arith.subf %9, %14 : vector<8x128xf32>
    %16 = arith.mulf %15, %15 : vector<8x128xf32>
    %cst_15 = arith.constant dense<0.000000e+00> : vector<128xf32>
    %17 = vector.multi_reduction <add>, %16, %cst_15 [0] : vector<8x128xf32> to vector<128xf32>
    %18 = vector.shape_cast %17 : vector<128xf32> to vector<1x128xf32>
    %cst_16 = arith.constant 8.000000e+00 : f32
    %19 = vector.broadcast %cst_16 : f32 to vector<1x128xf32>
    %20 = arith.divf %18, %19 : vector<1x128xf32>
    %21 = vector.broadcast %13 : vector<1x128xf32> to vector<8x128xf32>
    %22 = arith.subf %9, %21 : vector<8x128xf32>
    %cst_17 = arith.constant 9.99999974E-6 : f32
    %23 = vector.broadcast %cst_17 : f32 to vector<1x128xf32>
    %24 = arith.addf %20, %23 : vector<1x128xf32>
    %25 = math.rsqrt %24 : vector<1x128xf32>
    %26 = vector.broadcast %25 : vector<1x128xf32> to vector<8x128xf32>
    %27 = arith.mulf %22, %26 : vector<8x128xf32>
    %28 = vector.broadcast %3 : vector<1x128xf32> to vector<8x128xf32>
    %29 = arith.mulf %27, %28 : vector<8x128xf32>
    %30 = vector.broadcast %4 : vector<1x128xf32> to vector<8x128xf32>
    %31 = arith.addf %29, %30 : vector<8x128xf32>
    %cst_18 = arith.constant 0.000000e+00 : f32
    %32 = vector.broadcast %cst_18 : f32 to vector<8x128xf32>
    %33 = arith.maximumf %31, %32 : vector<8x128xf32>
    %34 = vector.extract_strided_slice %8 {offsets = [8, 0], sizes = [8, 128], strides = [1, 1]} : vector<16x128xf32> to vector<8x128xf32>
    %cst_19 = arith.constant dense<0.000000e+00> : vector<128xf32>
    %35 = vector.multi_reduction <add>, %34, %cst_19 [0] : vector<8x128xf32> to vector<128xf32>
    %36 = vector.shape_cast %35 : vector<128xf32> to vector<1x128xf32>
    %cst_20 = arith.constant 8.000000e+00 : f32
    %37 = vector.broadcast %cst_20 : f32 to vector<1x128xf32>
    %38 = arith.divf %36, %37 : vector<1x128xf32>
    %39 = vector.broadcast %38 : vector<1x128xf32> to vector<8x128xf32>
    %40 = arith.subf %34, %39 : vector<8x128xf32>
    %41 = arith.mulf %40, %40 : vector<8x128xf32>
    %cst_21 = arith.constant dense<0.000000e+00> : vector<128xf32>
    %42 = vector.multi_reduction <add>, %41, %cst_21 [0] : vector<8x128xf32> to vector<128xf32>
    %43 = vector.shape_cast %42 : vector<128xf32> to vector<1x128xf32>
    %cst_22 = arith.constant 8.000000e+00 : f32
    %44 = vector.broadcast %cst_22 : f32 to vector<1x128xf32>
    %45 = arith.divf %43, %44 : vector<1x128xf32>
    %46 = vector.broadcast %38 : vector<1x128xf32> to vector<8x128xf32>
    %47 = arith.subf %34, %46 : vector<8x128xf32>
    %cst_23 = arith.constant 9.99999974E-6 : f32
    %48 = vector.broadcast %cst_23 : f32 to vector<1x128xf32>
    %49 = arith.addf %45, %48 : vector<1x128xf32>
    %50 = math.rsqrt %49 : vector<1x128xf32>
    %51 = vector.broadcast %50 : vector<1x128xf32> to vector<8x128xf32>
    %52 = arith.mulf %47, %51 : vector<8x128xf32>
    %53 = vector.broadcast %3 : vector<1x128xf32> to vector<8x128xf32>
    %54 = arith.mulf %52, %53 : vector<8x128xf32>
    %55 = vector.broadcast %4 : vector<1x128xf32> to vector<8x128xf32>
    %56 = arith.addf %54, %55 : vector<8x128xf32>
    %cst_24 = arith.constant 0.000000e+00 : f32
    %57 = vector.broadcast %cst_24 : f32 to vector<8x128xf32>
    %58 = arith.maximumf %56, %57 : vector<8x128xf32>
    %59 = tpu.concatenate %33, %58 in 0 : vector<8x128xf32>, vector<8x128xf32> -> vector<16x128xf32>
    %60 = arith.truncf %59 : vector<16x128xf32> to vector<16x128xbf16>
    %c0_25 = arith.constant 0 : index
    %c0_26 = arith.constant 0 : index
    %61 = vector.load %arg4[%c0_25, %c0_26] : memref<128x128xbf16, #tpu.memory_space<vmem>>, vector<128x128xbf16>
    %cst_27 = arith.constant dense<0.000000e+00> : vector<16x128xf32>
    %62 = tpu.matmul %60, %61, %cst_27 {dimension_numbers = #tpu.dot_dimension_numbers<[1], [0], [0], [1], [0, 0, 1, 1], [], []>} : vector<16x128xbf16>, vector<128x128xbf16>, vector<16x128xf32> -> vector<16x128xf32>
    %63 = vector.extract_strided_slice %62 {offsets = [0, 0], sizes = [8, 128], strides = [1, 1]} : vector<16x128xf32> to vector<8x128xf32>
    %cst_28 = arith.constant dense<0.000000e+00> : vector<128xf32>
    %64 = vector.multi_reduction <add>, %63, %cst_28 [0] : vector<8x128xf32> to vector<128xf32>
    %65 = vector.shape_cast %64 : vector<128xf32> to vector<1x128xf32>
    %cst_29 = arith.constant 8.000000e+00 : f32
    %66 = vector.broadcast %cst_29 : f32 to vector<1x128xf32>
    %67 = arith.divf %65, %66 : vector<1x128xf32>
    %68 = vector.broadcast %67 : vector<1x128xf32> to vector<8x128xf32>
    %69 = arith.subf %63, %68 : vector<8x128xf32>
    %70 = arith.mulf %69, %69 : vector<8x128xf32>
    %cst_30 = arith.constant dense<0.000000e+00> : vector<128xf32>
    %71 = vector.multi_reduction <add>, %70, %cst_30 [0] : vector<8x128xf32> to vector<128xf32>
    %72 = vector.shape_cast %71 : vector<128xf32> to vector<1x128xf32>
    %cst_31 = arith.constant 8.000000e+00 : f32
    %73 = vector.broadcast %cst_31 : f32 to vector<1x128xf32>
    %74 = arith.divf %72, %73 : vector<1x128xf32>
    %75 = vector.broadcast %67 : vector<1x128xf32> to vector<8x128xf32>
    %76 = arith.subf %63, %75 : vector<8x128xf32>
    %cst_32 = arith.constant 9.99999974E-6 : f32
    %77 = vector.broadcast %cst_32 : f32 to vector<1x128xf32>
    %78 = arith.addf %74, %77 : vector<1x128xf32>
    %79 = math.rsqrt %78 : vector<1x128xf32>
    %80 = vector.broadcast %79 : vector<1x128xf32> to vector<8x128xf32>
    %81 = arith.mulf %76, %80 : vector<8x128xf32>
    %82 = vector.broadcast %5 : vector<1x128xf32> to vector<8x128xf32>
    %83 = arith.mulf %81, %82 : vector<8x128xf32>
    %84 = vector.broadcast %6 : vector<1x128xf32> to vector<8x128xf32>
    %85 = arith.addf %83, %84 : vector<8x128xf32>
    %cst_33 = arith.constant 0.000000e+00 : f32
    %86 = vector.broadcast %cst_33 : f32 to vector<8x128xf32>
    %87 = arith.maximumf %85, %86 : vector<8x128xf32>
    %88 = vector.extract_strided_slice %62 {offsets = [8, 0], sizes = [8, 128], strides = [1, 1]} : vector<16x128xf32> to vector<8x128xf32>
    %cst_34 = arith.constant dense<0.000000e+00> : vector<128xf32>
    %89 = vector.multi_reduction <add>, %88, %cst_34 [0] : vector<8x128xf32> to vector<128xf32>
    %90 = vector.shape_cast %89 : vector<128xf32> to vector<1x128xf32>
    %cst_35 = arith.constant 8.000000e+00 : f32
    %91 = vector.broadcast %cst_35 : f32 to vector<1x128xf32>
    %92 = arith.divf %90, %91 : vector<1x128xf32>
    %93 = vector.broadcast %92 : vector<1x128xf32> to vector<8x128xf32>
    %94 = arith.subf %88, %93 : vector<8x128xf32>
    %95 = arith.mulf %94, %94 : vector<8x128xf32>
    %cst_36 = arith.constant dense<0.000000e+00> : vector<128xf32>
    %96 = vector.multi_reduction <add>, %95, %cst_36 [0] : vector<8x128xf32> to vector<128xf32>
    %97 = vector.shape_cast %96 : vector<128xf32> to vector<1x128xf32>
    %cst_37 = arith.constant 8.000000e+00 : f32
    %98 = vector.broadcast %cst_37 : f32 to vector<1x128xf32>
    %99 = arith.divf %97, %98 : vector<1x128xf32>
    %100 = vector.broadcast %92 : vector<1x128xf32> to vector<8x128xf32>
    %101 = arith.subf %88, %100 : vector<8x128xf32>
    %cst_38 = arith.constant 9.99999974E-6 : f32
    %102 = vector.broadcast %cst_38 : f32 to vector<1x128xf32>
    %103 = arith.addf %99, %102 : vector<1x128xf32>
    %104 = math.rsqrt %103 : vector<1x128xf32>
    %105 = vector.broadcast %104 : vector<1x128xf32> to vector<8x128xf32>
    %106 = arith.mulf %101, %105 : vector<8x128xf32>
    %107 = vector.broadcast %5 : vector<1x128xf32> to vector<8x128xf32>
    %108 = arith.mulf %106, %107 : vector<8x128xf32>
    %109 = vector.broadcast %6 : vector<1x128xf32> to vector<8x128xf32>
    %110 = arith.addf %108, %109 : vector<8x128xf32>
    %cst_39 = arith.constant 0.000000e+00 : f32
    %111 = vector.broadcast %cst_39 : f32 to vector<8x128xf32>
    %112 = arith.maximumf %110, %111 : vector<8x128xf32>
    %113 = tpu.concatenate %87, %112 in 0 : vector<8x128xf32>, vector<8x128xf32> -> vector<16x128xf32>
    %114 = arith.truncf %113 : vector<16x128xf32> to vector<16x128xbf16>
    %c0_40 = arith.constant 0 : index
    %c0_41 = arith.constant 0 : index
    %115 = vector.load %arg5[%c0_40, %c0_41] : memref<128x128xbf16, #tpu.memory_space<vmem>>, vector<128x128xbf16>
    %cst_42 = arith.constant dense<0.000000e+00> : vector<16x128xf32>
    %116 = tpu.matmul %114, %115, %cst_42 {dimension_numbers = #tpu.dot_dimension_numbers<[1], [0], [0], [1], [0, 0, 1, 1], [], []>} : vector<16x128xbf16>, vector<128x128xbf16>, vector<16x128xf32> -> vector<16x128xf32>
    %117 = vector.extract_strided_slice %116 {offsets = [0, 0], sizes = [8, 128], strides = [1, 1]} : vector<16x128xf32> to vector<8x128xf32>
    %118 = vector.extract_strided_slice %116 {offsets = [8, 0], sizes = [8, 128], strides = [1, 1]} : vector<16x128xf32> to vector<8x128xf32>
    %c0_43 = arith.constant 0 : index
    %c0_44 = arith.constant 0 : index
    %119 = vector.load %arg2[%c0_43, %c0_44] : memref<8x128xf32, #tpu.memory_space<vmem>>, vector<8x128xf32>
    %120 = arith.mulf %118, %119 : vector<8x128xf32>
    %c0_45 = arith.constant 0 : index
    %c0_46 = arith.constant 0 : index
    %121 = vector.load %arg10[%c0_45, %c0_46] : memref<8x128xf32, #tpu.memory_space<vmem>>, vector<8x128xf32>
    tpu.vector_store %arg10[%c0_45, %c0_46], %117 {strides = array<i32>} : memref<8x128xf32, #tpu.memory_space<vmem>>, vector<8x128xf32>,
    %c0_47 = arith.constant 0 : index
    %c0_48 = arith.constant 0 : index
    %122 = vector.load %arg11[%c0_47, %c0_48] : memref<8x128xf32, #tpu.memory_space<vmem>>, vector<8x128xf32>
    tpu.vector_store %arg11[%c0_47, %c0_48], %120 {strides = array<i32>} : memref<8x128xf32, #tpu.memory_space<vmem>>, vector<8x128xf32>,
    %cst_49 = arith.constant dense<0.000000e+00> : vector<128xf32>
    %123 = vector.multi_reduction <add>, %117, %cst_49 [0] : vector<8x128xf32> to vector<128xf32>
    %124 = vector.shape_cast %123 : vector<128xf32> to vector<1x128xf32>
    %cst_50 = arith.constant 8.000000e+00 : f32
    %125 = vector.broadcast %cst_50 : f32 to vector<1x128xf32>
    %126 = arith.divf %124, %125 : vector<1x128xf32>
    %127 = vector.broadcast %126 : vector<1x128xf32> to vector<8x128xf32>
    %128 = arith.subf %117, %127 : vector<8x128xf32>
    %129 = arith.mulf %128, %128 : vector<8x128xf32>
    %cst_51 = arith.constant dense<0.000000e+00> : vector<128xf32>
    %130 = vector.multi_reduction <add>, %129, %cst_51 [0] : vector<8x128xf32> to vector<128xf32>
    %131 = vector.shape_cast %130 : vector<128xf32> to vector<1x128xf32>
    %cst_52 = arith.constant 8.000000e+00 : f32
    %132 = vector.broadcast %cst_52 : f32 to vector<1x128xf32>
    %133 = arith.divf %131, %132 : vector<1x128xf32>
    %134 = vector.broadcast %126 : vector<1x128xf32> to vector<8x128xf32>
    %135 = arith.subf %117, %134 : vector<8x128xf32>
    %cst_53 = arith.constant 9.99999974E-6 : f32
    %136 = vector.broadcast %cst_53 : f32 to vector<1x128xf32>
    %137 = arith.addf %133, %136 : vector<1x128xf32>
    %138 = math.rsqrt %137 : vector<1x128xf32>
    %139 = vector.broadcast %138 : vector<1x128xf32> to vector<8x128xf32>
    %140 = arith.mulf %135, %139 : vector<8x128xf32>
    %cst_54 = arith.constant dense<0.000000e+00> : vector<128xf32>
    %141 = vector.multi_reduction <add>, %120, %cst_54 [0] : vector<8x128xf32> to vector<128xf32>
    %142 = vector.shape_cast %141 : vector<128xf32> to vector<1x128xf32>
    %cst_55 = arith.constant 8.000000e+00 : f32
    %143 = vector.broadcast %cst_55 : f32 to vector<1x128xf32>
    %144 = arith.divf %142, %143 : vector<1x128xf32>
    %145 = vector.broadcast %144 : vector<1x128xf32> to vector<8x128xf32>
    %146 = arith.subf %120, %145 : vector<8x128xf32>
    %147 = arith.mulf %146, %146 : vector<8x128xf32>
    %cst_56 = arith.constant dense<0.000000e+00> : vector<128xf32>
    %148 = vector.multi_reduction <add>, %147, %cst_56 [0] : vector<8x128xf32> to vector<128xf32>
    %149 = vector.shape_cast %148 : vector<128xf32> to vector<1x128xf32>
    %cst_57 = arith.constant 8.000000e+00 : f32
    %150 = vector.broadcast %cst_57 : f32 to vector<1x128xf32>
    %151 = arith.divf %149, %150 : vector<1x128xf32>
    %152 = vector.broadcast %144 : vector<1x128xf32> to vector<8x128xf32>
    %153 = arith.subf %120, %152 : vector<8x128xf32>
    %cst_58 = arith.constant 9.99999974E-6 : f32
    %154 = vector.broadcast %cst_58 : f32 to vector<1x128xf32>
    %155 = arith.addf %151, %154 : vector<1x128xf32>
    %156 = math.rsqrt %155 : vector<1x128xf32>
    %157 = vector.broadcast %156 : vector<1x128xf32> to vector<8x128xf32>
    %158 = arith.mulf %153, %157 : vector<8x128xf32>
    %cst_59 = arith.constant dense<0.000000e+00> : vector<128x128xf32>
    %159 = tpu.matmul %140, %158, %cst_59 {dimension_numbers = #tpu.dot_dimension_numbers<[0], [0], [1], [1], [0, 1, 1, 1], [], []>} : vector<8x128xf32>, vector<8x128xf32>, vector<128x128xf32> -> vector<128x128xf32>
    %cst_60 = arith.constant 1.250000e-01 : f32
    %160 = vector.broadcast %cst_60 : f32 to vector<128x128xf32>
    %161 = arith.mulf %159, %160 : vector<128x128xf32>
    %162 = tpu.iota {dimensions = array<i32: 0>} : vector<128x128xi32>
    %163 = tpu.iota {dimensions = array<i32: 1>} : vector<128x128xi32>
    %164 = arith.cmpi eq, %162, %163 : vector<128x128xi32>
    %cst_61 = arith.constant 0.000000e+00 : f32
    %165 = vector.broadcast %cst_61 : f32 to vector<128x128xf32>
    %166 = arith.select %164, %161, %165 : vector<128x128xi1>, vector<128x128xf32>
    %167 = vector.shape_cast %166 : vector<128x128xf32> to vector<1x128x128xf32>
    %cst_62 = arith.constant dense<0.000000e+00> : vector<1xf32>
    %168 = vector.multi_reduction <add>, %167, %cst_62 [1, 2] : vector<1x128x128xf32> to vector<1xf32>
    %169 = vector.shape_cast %168 : vector<1xf32> to vector<1x1x1xf32>
    %170 = vector.extract %169[0, 0, 0] : f32 from vector<1x1x1xf32>
    %171 = arith.mulf %166, %166 : vector<128x128xf32>
    %172 = vector.shape_cast %171 : vector<128x128xf32> to vector<1x128x128xf32>
    %cst_63 = arith.constant dense<0.000000e+00> : vector<1xf32>
    %173 = vector.multi_reduction <add>, %172, %cst_63 [1, 2] : vector<1x128x128xf32> to vector<1xf32>
    %174 = vector.shape_cast %173 : vector<1xf32> to vector<1x1x1xf32>
    %175 = vector.extract %174[0, 0, 0] : f32 from vector<1x1x1xf32>
    %176 = arith.mulf %161, %161 : vector<128x128xf32>
    %177 = vector.shape_cast %176 : vector<128x128xf32> to vector<1x128x128xf32>
    %cst_64 = arith.constant dense<0.000000e+00> : vector<1xf32>
    %178 = vector.multi_reduction <add>, %177, %cst_64 [1, 2] : vector<1x128x128xf32> to vector<1xf32>
    %179 = vector.shape_cast %178 : vector<1xf32> to vector<1x1x1xf32>
    %180 = vector.extract %179[0, 0, 0] : f32 from vector<1x1x1xf32>
    %cst_65 = arith.constant 2.000000e+00 : f32
    %181 = arith.mulf %cst_65, %170 : f32
    %182 = arith.subf %175, %181 : f32
    %cst_66 = arith.constant 1.280000e+02 : f32
    %183 = arith.addf %182, %cst_66 : f32
    %184 = arith.subf %180, %175 : f32
    %cst_67 = arith.constant 5.000000e-03 : f32
    %185 = arith.mulf %cst_67, %184 : f32
    %186 = arith.addf %183, %185 : f32
    %187 = vector.broadcast %186 : f32 to vector<1x128xf32>
    %c0_68 = arith.constant 0 : index
    %c0_69 = arith.constant 0 : index
    %188 = vector.load %arg12[%c0_68, %c0_69] : memref<1x128xf32, #tpu.memory_space<vmem>>, vector<1x128xf32>
    tpu.vector_store %arg12[%c0_68, %c0_69], %187 {strides = array<i32>} : memref<1x128xf32, #tpu.memory_space<vmem>>, vector<1x128xf32>,
    return
  }
}

</mosaic_0001>

<llo_original>
// kernel: tpu_custom_call.1
$region0: #{tpu_custom_call.1}
  #allocation0 [shape = 'u32[]', space=smem, size = 0x4, offset = 0x4, fixed_abs, tag = 'smem constant byte address 0x4 - core index']
  #allocation1 [shape = 'u32[144,128]{1,0:T(1,128)}', space=vmem, size = 0x12000, scoped, tag = 'internal scratch']
  %s0 = inlined_call_operand.hbm [shape: bf16[16,1024], index: 0, kind: input, shape index: {}]
  %s1 = inlined_call_operand.hbm [shape: bf16[16,1024], index: 1, kind: input, shape index: {}]
  %s2 = inlined_call_operand.hbm [shape: f32[8,128], index: 2, kind: input, shape index: {}]
  %s3 = inlined_call_operand.hbm [shape: bf16[1024,128], index: 3, kind: input, shape index: {}]
  %s4 = inlined_call_operand.hbm [shape: bf16[128,128], index: 4, kind: input, shape index: {}]
  %s5 = inlined_call_operand.hbm [shape: bf16[128,128], index: 5, kind: input, shape index: {}]
  %s6 = inlined_call_operand.vmem [shape: f32[1,128], index: 6, kind: input, shape index: {}]
  %s7 = inlined_call_operand.vmem [shape: f32[1,128], index: 7, kind: input, shape index: {}]
  %s8 = inlined_call_operand.vmem [shape: f32[1,128], index: 8, kind: input, shape index: {}]
  %s9 = inlined_call_operand.vmem [shape: f32[1,128], index: 9, kind: input, shape index: {}]
  %s10 = inlined_call_operand.hbm [shape: f32[8,128], index: 10, kind: output, shape index: {0}]
  %s11 = inlined_call_operand.hbm [shape: f32[8,128], index: 11, kind: output, shape index: {1}]
  %s12 = inlined_call_operand.hbm [shape: f32[1,128], index: 12, kind: output, shape index: {2}]
  %13 = xla_tuple %s10, %s11, %s12
  %s14 = sld [smem:[#allocation0]]
  $region90: #{tpu_custom_call.1} parent=0
    _
  %s16 = ssub.s32 1, %s14
  %s17 = scalar_select 0, %s16, %s14
  $region1: #{tpu_custom_call.1} parent=0
    #allocation2 [shape = 'u8[32768]{0}', space=vmem, size = 0x8000, scoped, tag = 'input window, operand 0, single buffered']
    #allocation3 [shape = 's32[1]{0}', space=sflag, size = 0x4, scoped, tag = 'scoped memory for tpu_custom_call.1']
    #allocation4 [shape = 's32[1]{0}', space=sflag, size = 0x4, scoped, tag = 'scoped memory for tpu_custom_call.1']
    #allocation5 [shape = 'u8[32768]{0}', space=vmem, size = 0x8000, scoped, tag = 'input window, operand 1, single buffered']
    #allocation6 [shape = 's32[1]{0}', space=sflag, size = 0x4, scoped, tag = 'scoped memory for tpu_custom_call.1']
    #allocation7 [shape = 'u8[4096]{0}', space=vmem, size = 0x1000, scoped, tag = 'input window, operand 2, single buffered']
    #allocation8 [shape = 'u8[262144]{0}', space=vmem, size = 0x40000, scoped, tag = 'input window, operand 3, single buffered']
    #allocation9 [shape = 's32[1]{0}', space=sflag, size = 0x4, scoped, tag = 'scoped memory for tpu_custom_call.1']
    #allocation10 [shape = 'u8[32768]{0}', space=vmem, size = 0x8000, scoped, tag = 'input window, operand 4, single buffered']
    #allocation11 [shape = 'u8[32768]{0}', space=vmem, size = 0x8000, scoped, tag = 'input window, operand 5, single buffered']
    #allocation12 [shape = 's32[1]{0}', space=sflag, size = 0x4, scoped, tag = 'scoped memory for tpu_custom_call.1']
    #allocation13 [shape = 'u8[4096]{0}', space=vmem, size = 0x1000, scoped, tag = 'output window, operand 0, single buffered']
    #allocation14 [shape = 'u8[4096]{0}', space=vmem, size = 0x1000, scoped, tag = 'output window, operand 1, single buffered']
    #allocation15 [shape = 's32[1]{0}', space=sflag, size = 0x4, scoped, tag = 'scoped memory for tpu_custom_call.1']
    #allocation16 [shape = 'u8[512]{0}', space=vmem, size = 0x400, scoped, tag = 'output window, operand 2, single buffered']
    %18 = vsyncpa [#allocation3], 0
    %19 = vsyncpa [#allocation6], 0
    %20 = vsyncpa [#allocation9], 0
    %21 = vsyncpa [#allocation12], 0
    %22 = vsyncpa [#allocation4], 0
    %23 = vsyncpa [#allocation15], 0
    // Predicated region
    $region2: #{tpu_custom_call.1} parent=1 // pred_check
      _
    $region3: #{tpu_custom_call.1} parent=1 // pred_check_branch
      %25 = sbr.rel (0) target = $region5
    $region4: #{tpu_custom_call.1} parent=1 // pred_region
      %s27 = ssub.s32 1024, 1024
      %28 = vsyncadd [#allocation3], %s27
      %s29 = sshll.u32 [#allocation2], 4
      %s30 = int_to_ptr.vmem [resolvable:$true] %s29
      %35 = dma.hbm_to_vmem [thread:$0]  %s0, 1024, %s30, [#allocation3], 512, 512, 32
    $region5: #{tpu_custom_call.1} parent=1 // pred_fallthru
      _
    // Predicated region
    $region6: #{tpu_custom_call.1} parent=1 // pred_check
      _
    $region7: #{tpu_custom_call.1} parent=1 // pred_check_branch
      %37 = sbr.rel (0) target = $region9
    $region8: #{tpu_custom_call.1} parent=1 // pred_region
      %s39 = ssub.s32 1024, 1024
      %40 = vsyncadd [#allocation6], %s39
      %s41 = sshll.u32 [#allocation5], 4
      %s42 = int_to_ptr.vmem [resolvable:$true] %s41
      %47 = dma.hbm_to_vmem [thread:$0]  %s1, 1024, %s42, [#allocation6], 512, 512, 32
    $region9: #{tpu_custom_call.1} parent=1 // pred_fallthru
      _
    // Predicated region
    $region10: #{tpu_custom_call.1} parent=1 // pred_check
      _
    $region11: #{tpu_custom_call.1} parent=1 // pred_check_branch
      %49 = sbr.rel (0) target = $region13
    $region12: #{tpu_custom_call.1} parent=1 // pred_region
      %s51 = ssub.s32 128, 128
      %52 = vsyncadd [#allocation6], %s51
      %s54 = sshll.u32 [#allocation7], 4
      %s55 = int_to_ptr.vmem [resolvable:$true] %s54
      %57 = dma.hbm_to_vmem [thread:$0]  %s2, 128, %s55, [#allocation6]
    $region13: #{tpu_custom_call.1} parent=1 // pred_fallthru
      _
    // Predicated region
    $region14: #{tpu_custom_call.1} parent=1 // pred_check
      _
    $region15: #{tpu_custom_call.1} parent=1 // pred_check_branch
      %59 = sbr.rel (0) target = $region17
    $region16: #{tpu_custom_call.1} parent=1 // pred_region
      %s61 = ssub.s32 8192, 8192
      %62 = vsyncadd [#allocation9], %s61
      %s63 = sshll.u32 [#allocation8], 4
      %s64 = int_to_ptr.vmem [resolvable:$true] %s63
      %69 = dma.hbm_to_vmem [thread:$0]  %s3, 8192, %s64, [#allocation9], 64, 64, 4
    $region17: #{tpu_custom_call.1} parent=1 // pred_fallthru
      _
    // Predicated region
    $region18: #{tpu_custom_call.1} parent=1 // pred_check
      _
    $region19: #{tpu_custom_call.1} parent=1 // pred_check_branch
      %71 = sbr.rel (0) target = $region21
    $region20: #{tpu_custom_call.1} parent=1 // pred_region
      %s73 = ssub.s32 1024, 1024
      %74 = vsyncadd [#allocation9], %s73
      %s75 = sshll.u32 [#allocation10], 4
      %s76 = int_to_ptr.vmem [resolvable:$true] %s75
      %81 = dma.hbm_to_vmem [thread:$0]  %s4, 1024, %s76, [#allocation9], 64, 64, 4
    $region21: #{tpu_custom_call.1} parent=1 // pred_fallthru
      _
    // Predicated region
    $region22: #{tpu_custom_call.1} parent=1 // pred_check
      _
    $region23: #{tpu_custom_call.1} parent=1 // pred_check_branch
      %83 = sbr.rel (0) target = $region25
    $region24: #{tpu_custom_call.1} parent=1 // pred_region
      %s85 = ssub.s32 1024, 1024
      %86 = vsyncadd [#allocation12], %s85
      %s87 = sshll.u32 [#allocation11], 4
      %s88 = int_to_ptr.vmem [resolvable:$true] %s87
      %93 = dma.hbm_to_vmem [thread:$0]  %s5, 1024, %s88, [#allocation12], 64, 64, 4
    $region25: #{tpu_custom_call.1} parent=1 // pred_fallthru
      _
    // Predicated region
    $region26: #{tpu_custom_call.1} parent=1 // pred_check
      _
    $region27: #{tpu_custom_call.1} parent=1 // pred_check_branch
      %95 = sbr.rel (0) target = $region29
    $region28: #{tpu_custom_call.1} parent=1 // pred_region
      _
    $region29: #{tpu_custom_call.1} parent=1 // pred_fallthru
      _
    // Predicated region
    $region30: #{tpu_custom_call.1} parent=1 // pred_check
      _
    $region31: #{tpu_custom_call.1} parent=1 // pred_check_branch
      %97 = sbr.rel (0) target = $region33
    $region32: #{tpu_custom_call.1} parent=1 // pred_region
      _
    $region33: #{tpu_custom_call.1} parent=1 // pred_fallthru
      _
    // Predicated region
    $region34: #{tpu_custom_call.1} parent=1 // pred_check
      _
    $region35: #{tpu_custom_call.1} parent=1 // pred_check_branch
      %99 = sbr.rel (0) target = $region37
    $region36: #{tpu_custom_call.1} parent=1 // pred_region
      _
    $region37: #{tpu_custom_call.1} parent=1 // pred_fallthru
      _
    // Predicated region
    $region38: #{tpu_custom_call.1} parent=1 // pred_check
      _
    $region39: #{tpu_custom_call.1} parent=1 // pred_check_branch
      %101 = sbr.rel (0) target = $region41
    $region40: #{tpu_custom_call.1} parent=1 // pred_region
      _
    $region41: #{tpu_custom_call.1} parent=1 // pred_fallthru
      _
    // Predicated region
    $region42: #{tpu_custom_call.1} parent=1 // pred_check
      _
    $region43: #{tpu_custom_call.1} parent=1 // pred_check_branch
      %103 = sbr.rel (0) target = $region45
    $region44: #{tpu_custom_call.1} parent=1 // pred_region
      %104 = dma.done [#allocation3], 1024
    $region45: #{tpu_custom_call.1} parent=1 // pred_fallthru
      _
    // Predicated region
    $region46: #{tpu_custom_call.1} parent=1 // pred_check
      _
    $region47: #{tpu_custom_call.1} parent=1 // pred_check_branch
      %106 = sbr.rel (0) target = $region49
    $region48: #{tpu_custom_call.1} parent=1 // pred_region
      %107 = dma.done [#allocation6], 1024
    $region49: #{tpu_custom_call.1} parent=1 // pred_fallthru
      _
    // Predicated region
    $region50: #{tpu_custom_call.1} parent=1 // pred_check
      _
    $region51: #{tpu_custom_call.1} parent=1 // pred_check_branch
      %109 = sbr.rel (0) target = $region53
    $region52: #{tpu_custom_call.1} parent=1 // pred_region
      %110 = dma.done [#allocation6], 128
    $region53: #{tpu_custom_call.1} parent=1 // pred_fallthru
      _
    // Predicated region
    $region54: #{tpu_custom_call.1} parent=1 // pred_check
      _
    $region55: #{tpu_custom_call.1} parent=1 // pred_check_branch
      %112 = sbr.rel (0) target = $region57
    $region56: #{tpu_custom_call.1} parent=1 // pred_region
      %113 = dma.done [#allocation9], 8192
    $region57: #{tpu_custom_call.1} parent=1 // pred_fallthru
      _
    // Predicated region
    $region58: #{tpu_custom_call.1} parent=1 // pred_check
      _
    $region59: #{tpu_custom_call.1} parent=1 // pred_check_branch
      %115 = sbr.rel (0) target = $region61
    $region60: #{tpu_custom_call.1} parent=1 // pred_region
      %116 = dma.done [#allocation9], 1024
    $region61: #{tpu_custom_call.1} parent=1 // pred_fallthru
      _
    // Predicated region
    $region62: #{tpu_custom_call.1} parent=1 // pred_check
      _
    $region63: #{tpu_custom_call.1} parent=1 // pred_check_branch
      %118 = sbr.rel (0) target = $region65
    $region64: #{tpu_custom_call.1} parent=1 // pred_region
      %119 = dma.done [#allocation12], 1024
    $region65: #{tpu_custom_call.1} parent=1 // pred_fallthru
      _
    %v121 = vld [vmem:[#allocation2] sm:$0xff]
    %v122 = vld [vmem:[#allocation2 + $0x8] sm:$0xff]
    %v123 = vld [vmem:[#allocation2 + $0x10] sm:$0xff]
    %v124 = vld [vmem:[#allocation2 + $0x18] sm:$0xff]
    %v125 = vld [vmem:[#allocation2 + $0x20] sm:$0xff]
    %v126 = vld [vmem:[#allocation2 + $0x28] sm:$0xff]
    %v127 = vld [vmem:[#allocation2 + $0x30] sm:$0xff]
    %v128 = vld [vmem:[#allocation2 + $0x38] sm:$0xff]
    %v129 = vld [vmem:[#allocation5] sm:$0xff]
    %v130 = vld [vmem:[#allocation5 + $0x8] sm:$0xff]
    %v131 = vld [vmem:[#allocation5 + $0x10] sm:$0xff]
    %v132 = vld [vmem:[#allocation5 + $0x18] sm:$0xff]
    %v133 = vld [vmem:[#allocation5 + $0x20] sm:$0xff]
    %v134 = vld [vmem:[#allocation5 + $0x28] sm:$0xff]
    %v135 = vld [vmem:[#allocation5 + $0x30] sm:$0xff]
    %v136 = vld [vmem:[#allocation5 + $0x38] sm:$0xff]
    %v137 = vmul.bf16 %v121, %v129
    %v138 = vmul.bf16 %v122, %v130
    %v139 = vmul.bf16 %v123, %v131
    %v140 = vmul.bf16 %v124, %v132
    %v141 = vmul.bf16 %v125, %v133
    %v142 = vmul.bf16 %v126, %v134
    %v143 = vmul.bf16 %v127, %v135
    %v144 = vmul.bf16 %v128, %v136
    %v145 = vld [vmem:[%s6] sm:$0x1]
    %v146 = vld [vmem:[%s7] sm:$0x1]
    %v147 = vld [vmem:[%s8] sm:$0x1]
    %v148 = vld [vmem:[%s9] sm:$0x1]
    %v149 = vld [vmem:[#allocation8] sm:$0xf]
    %v150 = vld [vmem:[#allocation8 + $0x4] sm:$0xf]
    %v151 = vld [vmem:[#allocation8 + $0x8] sm:$0xf]
    %v152 = vld [vmem:[#allocation8 + $0xc] sm:$0xf]
    %v153 = vld [vmem:[#allocation8 + $0x10] sm:$0xf]
    %v154 = vld [vmem:[#allocation8 + $0x14] sm:$0xf]
    %v155 = vld [vmem:[#allocation8 + $0x18] sm:$0xf]
    %v156 = vld [vmem:[#allocation8 + $0x1c] sm:$0xf]
    %v157 = vld [vmem:[#allocation8 + $0x20] sm:$0xf]
    %v158 = vld [vmem:[#allocation8 + $0x24] sm:$0xf]
    %v159 = vld [vmem:[#allocation8 + $0x28] sm:$0xf]
    %v160 = vld [vmem:[#allocation8 + $0x2c] sm:$0xf]
    %v161 = vld [vmem:[#allocation8 + $0x30] sm:$0xf]
    %v162 = vld [vmem:[#allocation8 + $0x34] sm:$0xf]
    %v163 = vld [vmem:[#allocation8 + $0x38] sm:$0xf]
    %v164 = vld [vmem:[#allocation8 + $0x3c] sm:$0xf]
    %v165 = vld [vmem:[#allocation8 + $0x40] sm:$0xf]
    %v166 = vld [vmem:[#allocation8 + $0x44] sm:$0xf]
    %v167 = vld [vmem:[#allocation8 + $0x48] sm:$0xf]
    %v168 = vld [vmem:[#allocation8 + $0x4c] sm:$0xf]
    %v169 = vld [vmem:[#allocation8 + $0x50] sm:$0xf]
    %v170 = vld [vmem:[#allocation8 + $0x54] sm:$0xf]
    %v171 = vld [vmem:[#allocation8 + $0x58] sm:$0xf]
    %v172 = vld [vmem:[#allocation8 + $0x5c] sm:$0xf]
    %v173 = vld [vmem:[#allocation8 + $0x60] sm:$0xf]
    %v174 = vld [vmem:[#allocation8 + $0x64] sm:$0xf]
    %v175 = vld [vmem:[#allocation8 + $0x68] sm:$0xf]
    %v176 = vld [vmem:[#allocation8 + $0x6c] sm:$0xf]
    %v177 = vld [vmem:[#allocation8 + $0x70] sm:$0xf]
    %v178 = vld [vmem:[#allocation8 + $0x74] sm:$0xf]
    %v179 = vld [vmem:[#allocation8 + $0x78] sm:$0xf]
    %v180 = vld [vmem:[#allocation8 + $0x7c] sm:$0xf]
    %v181 = vld [vmem:[#allocation8 + $0x80] sm:$0xf]
    %v182 = vld [vmem:[#allocation8 + $0x84] sm:$0xf]
    %v183 = vld [vmem:[#allocation8 + $0x88] sm:$0xf]
    %v184 = vld [vmem:[#allocation8 + $0x8c] sm:$0xf]
    %v185 = vld [vmem:[#allocation8 + $0x90] sm:$0xf]
    %v186 = vld [vmem:[#allocation8 + $0x94] sm:$0xf]
    %v187 = vld [vmem:[#allocation8 + $0x98] sm:$0xf]
    %v188 = vld [vmem:[#allocation8 + $0x9c] sm:$0xf]
    %v189 = vld [vmem:[#allocation8 + $0xa0] sm:$0xf]
    %v190 = vld [vmem:[#allocation8 + $0xa4] sm:$0xf]
    %v191 = vld [vmem:[#allocation8 + $0xa8] sm:$0xf]
    %v192 = vld [vmem:[#allocation8 + $0xac] sm:$0xf]
    %v193 = vld [vmem:[#allocation8 + $0xb0] sm:$0xf]
    %v194 = vld [vmem:[#allocation8 + $0xb4] sm:$0xf]
    %v195 = vld [vmem:[#allocation8 + $0xb8] sm:$0xf]
    %v196 = vld [vmem:[#allocation8 + $0xbc] sm:$0xf]
    %v197 = vld [vmem:[#allocation8 + $0xc0] sm:$0xf]
    %v198 = vld [vmem:[#allocation8 + $0xc4] sm:$0xf]
    %v199 = vld [vmem:[#allocation8 + $0xc8] sm:$0xf]
    %v200 = vld [vmem:[#allocation8 + $0xcc] sm:$0xf]
    %v201 = vld [vmem:[#allocation8 + $0xd0] sm:$0xf]
    %v202 = vld [vmem:[#allocation8 + $0xd4] sm:$0xf]
    %v203 = vld [vmem:[#allocation8 + $0xd8] sm:$0xf]
    %v204 = vld [vmem:[#allocation8 + $0xdc] sm:$0xf]
    %v205 = vld [vmem:[#allocation8 + $0xe0] sm:$0xf]
    %v206 = vld [vmem:[#allocation8 + $0xe4] sm:$0xf]
    %v207 = vld [vmem:[#allocation8 + $0xe8] sm:$0xf]
    %v208 = vld [vmem:[#allocation8 + $0xec] sm:$0xf]
    %v209 = vld [vmem:[#allocation8 + $0xf0] sm:$0xf]
    %v210 = vld [vmem:[#allocation8 + $0xf4] sm:$0xf]
    %v211 = vld [vmem:[#allocation8 + $0xf8] sm:$0xf]
    %v212 = vld [vmem:[#allocation8 + $0xfc] sm:$0xf]
    %v213 = vld [vmem:[#allocation8 + $0x100] sm:$0xf]
    %v214 = vld [vmem:[#allocation8 + $0x104] sm:$0xf]
    %v215 = vld [vmem:[#allocation8 + $0x108] sm:$0xf]
    %v216 = vld [vmem:[#allocation8 + $0x10c] sm:$0xf]
    %v217 = vld [vmem:[#allocation8 + $0x110] sm:$0xf]
    %v218 = vld [vmem:[#allocation8 + $0x114] sm:$0xf]
    %v219 = vld [vmem:[#allocation8 + $0x118] sm:$0xf]
    %v220 = vld [vmem:[#allocation8 + $0x11c] sm:$0xf]
    %v221 = vld [vmem:[#allocation8 + $0x120] sm:$0xf]
    %v222 = vld [vmem:[#allocation8 + $0x124] sm:$0xf]
    %v223 = vld [vmem:[#allocation8 + $0x128] sm:$0xf]
    %v224 = vld [vmem:[#allocation8 + $0x12c] sm:$0xf]
    %v225 = vld [vmem:[#allocation8 + $0x130] sm:$0xf]
    %v226 = vld [vmem:[#allocation8 + $0x134] sm:$0xf]
    %v227 = vld [vmem:[#allocation8 + $0x138] sm:$0xf]
    %v228 = vld [vmem:[#allocation8 + $0x13c] sm:$0xf]
    %v229 = vld [vmem:[#allocation8 + $0x140] sm:$0xf]
    %v230 = vld [vmem:[#allocation8 + $0x144] sm:$0xf]
    %v231 = vld [vmem:[#allocation8 + $0x148] sm:$0xf]
    %v232 = vld [vmem:[#allocation8 + $0x14c] sm:$0xf]
    %v233 = vld [vmem:[#allocation8 + $0x150] sm:$0xf]
    %v234 = vld [vmem:[#allocation8 + $0x154] sm:$0xf]
    %v235 = vld [vmem:[#allocation8 + $0x158] sm:$0xf]
    %v236 = vld [vmem:[#allocation8 + $0x15c] sm:$0xf]
    %v237 = vld [vmem:[#allocation8 + $0x160] sm:$0xf]
    %v238 = vld [vmem:[#allocation8 + $0x164] sm:$0xf]
    %v239 = vld [vmem:[#allocation8 + $0x168] sm:$0xf]
    %v240 = vld [vmem:[#allocation8 + $0x16c] sm:$0xf]
    %v241 = vld [vmem:[#allocation8 + $0x170] sm:$0xf]
    %v242 = vld [vmem:[#allocation8 + $0x174] sm:$0xf]
    %v243 = vld [vmem:[#allocation8 + $0x178] sm:$0xf]
    %v244 = vld [vmem:[#allocation8 + $0x17c] sm:$0xf]
    %v245 = vld [vmem:[#allocation8 + $0x180] sm:$0xf]
    %v246 = vld [vmem:[#allocation8 + $0x184] sm:$0xf]
    %v247 = vld [vmem:[#allocation8 + $0x188] sm:$0xf]
    %v248 = vld [vmem:[#allocation8 + $0x18c] sm:$0xf]
    %v249 = vld [vmem:[#allocation8 + $0x190] sm:$0xf]
    %v250 = vld [vmem:[#allocation8 + $0x194] sm:$0xf]
    %v251 = vld [vmem:[#allocation8 + $0x198] sm:$0xf]
    %v252 = vld [vmem:[#allocation8 + $0x19c] sm:$0xf]
    %v253 = vld [vmem:[#allocation8 + $0x1a0] sm:$0xf]
    %v254 = vld [vmem:[#allocation8 + $0x1a4] sm:$0xf]
    %v255 = vld [vmem:[#allocation8 + $0x1a8] sm:$0xf]
    %v256 = vld [vmem:[#allocation8 + $0x1ac] sm:$0xf]
    %v257 = vld [vmem:[#allocation8 + $0x1b0] sm:$0xf]
    %v258 = vld [vmem:[#allocation8 + $0x1b4] sm:$0xf]
    %v259 = vld [vmem:[#allocation8 + $0x1b8] sm:$0xf]
    %v260 = vld [vmem:[#allocation8 + $0x1bc] sm:$0xf]
    %v261 = vld [vmem:[#allocation8 + $0x1c0] sm:$0xf]
    %v262 = vld [vmem:[#allocation8 + $0x1c4] sm:$0xf]
    %v263 = vld [vmem:[#allocation8 + $0x1c8] sm:$0xf]
    %v264 = vld [vmem:[#allocation8 + $0x1cc] sm:$0xf]
    %v265 = vld [vmem:[#allocation8 + $0x1d0] sm:$0xf]
    %v266 = vld [vmem:[#allocation8 + $0x1d4] sm:$0xf]
    %v267 = vld [vmem:[#allocation8 + $0x1d8] sm:$0xf]
    %v268 = vld [vmem:[#allocation8 + $0x1dc] sm:$0xf]
    %v269 = vld [vmem:[#allocation8 + $0x1e0] sm:$0xf]
    %v270 = vld [vmem:[#allocation8 + $0x1e4] sm:$0xf]
    %v271 = vld [vmem:[#allocation8 + $0x1e8] sm:$0xf]
    %v272 = vld [vmem:[#allocation8 + $0x1ec] sm:$0xf]
    %v273 = vld [vmem:[#allocation8 + $0x1f0] sm:$0xf]
    %v274 = vld [vmem:[#allocation8 + $0x1f4] sm:$0xf]
    %v275 = vld [vmem:[#allocation8 + $0x1f8] sm:$0xf]
    %v276 = vld [vmem:[#allocation8 + $0x1fc] sm:$0xf]
    %v285 = vunpack.c.l.b16 %v137
    %v286 = vunpack.c.h.b16 %v137
    %v287 = vunpack.c.l.b16 %v138
    %v288 = vunpack.c.h.b16 %v138
    %v289 = vunpack.c.l.b16 %v139
    %v290 = vunpack.c.h.b16 %v139
    %v291 = vunpack.c.l.b16 %v140
    %v292 = vunpack.c.h.b16 %v140
    %v293 = vunpack.c.l.b16 %v141
    %v294 = vunpack.c.h.b16 %v141
    %v295 = vunpack.c.l.b16 %v142
    %v296 = vunpack.c.h.b16 %v142
    %v297 = vunpack.c.l.b16 %v143
    %v298 = vunpack.c.h.b16 %v143
    %v299 = vunpack.c.l.b16 %v144
    %v300 = vunpack.c.h.b16 %v144
    %v301 = vpack.c.b16 %v293, %v285
    %v302 = vpack.c.b16 %v294, %v286
    %v303 = vpack.c.b16 %v295, %v287
    %v304 = vpack.c.b16 %v296, %v288
    %v305 = vpack.c.b16 %v297, %v289
    %v306 = vpack.c.b16 %v298, %v290
    %v307 = vpack.c.b16 %v299, %v291
    %v308 = vpack.c.b16 %v300, %v292
    %v445 = vunpack.c.l.b16 %v149
    %v446 = vunpack.c.l.b16 %v150
    %v447 = vunpack.c.l.b16 %v151
    %v448 = vunpack.c.l.b16 %v152
    %v449 = vunpack.c.l.b16 %v153
    %v450 = vunpack.c.l.b16 %v154
    %v451 = vunpack.c.l.b16 %v155
    %v452 = vunpack.c.l.b16 %v156
    %v453 = vunpack.c.l.b16 %v157
    %v454 = vunpack.c.l.b16 %v158
    %v455 = vunpack.c.l.b16 %v159
    %v456 = vunpack.c.l.b16 %v160
    %v457 = vunpack.c.l.b16 %v161
    %v458 = vunpack.c.l.b16 %v162
    %v459 = vunpack.c.l.b16 %v163
    %v460 = vunpack.c.l.b16 %v164
    %v461 = vunpack.c.l.b16 %v165
    %v462 = vunpack.c.l.b16 %v166
    %v463 = vunpack.c.l.b16 %v167
    %v464 = vunpack.c.l.b16 %v168
    %v465 = vunpack.c.l.b16 %v169
    %v466 = vunpack.c.l.b16 %v170
    %v467 = vunpack.c.l.b16 %v171
    %v468 = vunpack.c.l.b16 %v172
    %v469 = vunpack.c.l.b16 %v173
    %v470 = vunpack.c.l.b16 %v174
    %v471 = vunpack.c.l.b16 %v175
    %v472 = vunpack.c.l.b16 %v176
    %v473 = vunpack.c.l.b16 %v177
    %v474 = vunpack.c.l.b16 %v178
    %v475 = vunpack.c.l.b16 %v179
    %v476 = vunpack.c.l.b16 %v180
    %v477 = vunpack.c.l.b16 %v181
    %v478 = vunpack.c.l.b16 %v182
    %v479 = vunpack.c.l.b16 %v183
    %v480 = vunpack.c.l.b16 %v184
    %v481 = vunpack.c.l.b16 %v185
    %v482 = vunpack.c.l.b16 %v186
    %v483 = vunpack.c.l.b16 %v187
    %v484 = vunpack.c.l.b16 %v188
    %v485 = vunpack.c.l.b16 %v189
    %v486 = vunpack.c.l.b16 %v190
    %v487 = vunpack.c.l.b16 %v191
    %v488 = vunpack.c.l.b16 %v192
    %v489 = vunpack.c.l.b16 %v193
    %v490 = vunpack.c.l.b16 %v194
    %v491 = vunpack.c.l.b16 %v195
    %v492 = vunpack.c.l.b16 %v196
    %v493 = vunpack.c.l.b16 %v197
    %v494 = vunpack.c.l.b16 %v198
    %v495 = vunpack.c.l.b16 %v199
    %v496 = vunpack.c.l.b16 %v200
    %v497 = vunpack.c.l.b16 %v201
    %v498 = vunpack.c.l.b16 %v202
    %v499 = vunpack.c.l.b16 %v203
    %v500 = vunpack.c.l.b16 %v204
    %v501 = vunpack.c.l.b16 %v205
    %v502 = vunpack.c.l.b16 %v206
    %v503 = vunpack.c.l.b16 %v207
    %v504 = vunpack.c.l.b16 %v208
    %v505 = vunpack.c.l.b16 %v209
    %v506 = vunpack.c.l.b16 %v210
    %v507 = vunpack.c.l.b16 %v211
    %v508 = vunpack.c.l.b16 %v212
    %v509 = vunpack.c.l.b16 %v213
    %v510 = vunpack.c.l.b16 %v214
    %v511 = vunpack.c.l.b16 %v215
    %v512 = vunpack.c.l.b16 %v216
    %v513 = vunpack.c.l.b16 %v217
    %v514 = vunpack.c.l.b16 %v218
    %v515 = vunpack.c.l.b16 %v219
    %v516 = vunpack.c.l.b16 %v220
    %v517 = vunpack.c.l.b16 %v221
    %v518 = vunpack.c.l.b16 %v222
    %v519 = vunpack.c.l.b16 %v223
    %v520 = vunpack.c.l.b16 %v224
    %v521 = vunpack.c.l.b16 %v225
    %v522 = vunpack.c.l.b16 %v226
    %v523 = vunpack.c.l.b16 %v227
    %v524 = vunpack.c.l.b16 %v228
    %v525 = vunpack.c.l.b16 %v229
    %v526 = vunpack.c.l.b16 %v230
    %v527 = vunpack.c.l.b16 %v231
    %v528 = vunpack.c.l.b16 %v232
    %v529 = vunpack.c.l.b16 %v233
    %v530 = vunpack.c.l.b16 %v234
    %v531 = vunpack.c.l.b16 %v235
    %v532 = vunpack.c.l.b16 %v236
    %v533 = vunpack.c.l.b16 %v237
    %v534 = vunpack.c.l.b16 %v238
    %v535 = vunpack.c.l.b16 %v239
    %v536 = vunpack.c.l.b16 %v240
    %v537 = vunpack.c.l.b16 %v241
    %v538 = vunpack.c.l.b16 %v242
    %v539 = vunpack.c.l.b16 %v243
    %v540 = vunpack.c.l.b16 %v244
    %v541 = vunpack.c.l.b16 %v245
    %v542 = vunpack.c.l.b16 %v246
    %v543 = vunpack.c.l.b16 %v247
    %v544 = vunpack.c.l.b16 %v248
    %v545 = vunpack.c.l.b16 %v249
    %v546 = vunpack.c.l.b16 %v250
    %v547 = vunpack.c.l.b16 %v251
    %v548 = vunpack.c.l.b16 %v252
    %v549 = vunpack.c.l.b16 %v253
    %v550 = vunpack.c.l.b16 %v254
    %v551 = vunpack.c.l.b16 %v255
    %v552 = vunpack.c.l.b16 %v256
    %v553 = vunpack.c.l.b16 %v257
    %v554 = vunpack.c.l.b16 %v258
    %v555 = vunpack.c.l.b16 %v259
    %v556 = vunpack.c.l.b16 %v260
    %v557 = vunpack.c.l.b16 %v261
    %v558 = vunpack.c.l.b16 %v262
    %v559 = vunpack.c.l.b16 %v263
    %v560 = vunpack.c.l.b16 %v264
    %v561 = vunpack.c.l.b16 %v265
    %v562 = vunpack.c.l.b16 %v266
    %v563 = vunpack.c.l.b16 %v267
    %v564 = vunpack.c.l.b16 %v268
    %v565 = vunpack.c.l.b16 %v269
    %v566 = vunpack.c.l.b16 %v270
    %v567 = vunpack.c.l.b16 %v271
    %v568 = vunpack.c.l.b16 %v272
    %v569 = vunpack.c.l.b16 %v273
    %v570 = vunpack.c.l.b16 %v274
    %v571 = vunpack.c.l.b16 %v275
    %v572 = vunpack.c.l.b16 %v276
    %v573 = vpack.c.b16 %v446, %v445
    %v574 = vpack.c.b16 %v448, %v447
    %v575 = vpack.c.b16 %v450, %v449
    %v576 = vpack.c.b16 %v452, %v451
    %v577 = vpack.c.b16 %v454, %v453
    %v578 = vpack.c.b16 %v456, %v455
    %v579 = vpack.c.b16 %v458, %v457
    %v580 = vpack.c.b16 %v460, %v459
    %v581 = vpack.c.b16 %v462, %v461
    %v582 = vpack.c.b16 %v464, %v463
    %v583 = vpack.c.b16 %v466, %v465
    %v584 = vpack.c.b16 %v468, %v467
    %v585 = vpack.c.b16 %v470, %v469
    %v586 = vpack.c.b16 %v472, %v471
    %v587 = vpack.c.b16 %v474, %v473
    %v588 = vpack.c.b16 %v476, %v475
    %v589 = vpack.c.b16 %v478, %v477
    %v590 = vpack.c.b16 %v480, %v479
    %v591 = vpack.c.b16 %v482, %v481
    %v592 = vpack.c.b16 %v484, %v483
    %v593 = vpack.c.b16 %v486, %v485
    %v594 = vpack.c.b16 %v488, %v487
    %v595 = vpack.c.b16 %v490, %v489
    %v596 = vpack.c.b16 %v492, %v491
    %v597 = vpack.c.b16 %v494, %v493
    %v598 = vpack.c.b16 %v496, %v495
    %v599 = vpack.c.b16 %v498, %v497
    %v600 = vpack.c.b16 %v500, %v499
    %v601 = vpack.c.b16 %v502, %v501
    %v602 = vpack.c.b16 %v504, %v503
    %v603 = vpack.c.b16 %v506, %v505
    %v604 = vpack.c.b16 %v508, %v507
    %v605 = vpack.c.b16 %v510, %v509
    %v606 = vpack.c.b16 %v512, %v511
    %v607 = vpack.c.b16 %v514, %v513
    %v608 = vpack.c.b16 %v516, %v515
    %v609 = vpack.c.b16 %v518, %v517
    %v610 = vpack.c.b16 %v520, %v519
    %v611 = vpack.c.b16 %v522, %v521
    %v612 = vpack.c.b16 %v524, %v523
    %v613 = vpack.c.b16 %v526, %v525
    %v614 = vpack.c.b16 %v528, %v527
    %v615 = vpack.c.b16 %v530, %v529
    %v616 = vpack.c.b16 %v532, %v531
    %v617 = vpack.c.b16 %v534, %v533
    %v618 = vpack.c.b16 %v536, %v535
    %v619 = vpack.c.b16 %v538, %v537
    %v620 = vpack.c.b16 %v540, %v539
    %v621 = vpack.c.b16 %v542, %v541
    %v622 = vpack.c.b16 %v544, %v543
    %v623 = vpack.c.b16 %v546, %v545
    %v624 = vpack.c.b16 %v548, %v547
    %v625 = vpack.c.b16 %v550, %v549
    %v626 = vpack.c.b16 %v552, %v551
    %v627 = vpack.c.b16 %v554, %v553
    %v628 = vpack.c.b16 %v556, %v555
    %v629 = vpack.c.b16 %v558, %v557
    %v630 = vpack.c.b16 %v560, %v559
    %v631 = vpack.c.b16 %v562, %v561
    %v632 = vpack.c.b16 %v564, %v563
    %v633 = vpack.c.b16 %v566, %v565
    %v634 = vpack.c.b16 %v568, %v567
    %v635 = vpack.c.b16 %v570, %v569
    %v636 = vpack.c.b16 %v572, %v571
    %701 = vmatprep.subr.bf16.mxu0 0
    %702 = vmatpush1.bf16.msra.mxu0 %v573
    %703 = vmatprep.subr.bf16.mxu0 0
    %704 = vmatpush1.bf16.msra.mxu0 %v574
    %705 = vmatprep.subr.bf16.mxu0 0
    %706 = vmatpush1.bf16.msra.mxu0 %v575
    %707 = vmatprep.subr.bf16.mxu0 0
    %708 = vmatpush1.bf16.msra.mxu0 %v576
    %709 = vmatprep.subr.bf16.mxu0 0
    %710 = vmatpush1.bf16.msra.mxu0 %v577
    %711 = vmatprep.subr.bf16.mxu0 0
    %712 = vmatpush1.bf16.msra.mxu0 %v578
    %713 = vmatprep.subr.bf16.mxu0 0
    %714 = vmatpush1.bf16.msra.mxu0 %v579
    %715 = vmatprep.subr.bf16.mxu0 0
    %716 = vmatpush1.bf16.msra.mxu0 %v580
    %717 = vmatprep.subr.bf16.mxu0 0
    %718 = vmatpush1.bf16.msra.mxu0 %v581
    %719 = vmatprep.subr.bf16.mxu0 0
    %720 = vmatpush1.bf16.msra.mxu0 %v582
    %721 = vmatprep.subr.bf16.mxu0 0
    %722 = vmatpush1.bf16.msra.mxu0 %v583
    %723 = vmatprep.subr.bf16.mxu0 0
    %724 = vmatpush1.bf16.msra.mxu0 %v584
    %725 = vmatprep.subr.bf16.mxu0 0
    %726 = vmatpush1.bf16.msra.mxu0 %v585
    %727 = vmatprep.subr.bf16.mxu0 0
    %728 = vmatpush1.bf16.msra.mxu0 %v586
    %729 = vmatprep.subr.bf16.mxu0 0
    %730 = vmatpush1.bf16.msra.mxu0 %v587
    %731 = vmatprep.subr.bf16.mxu0 0
    %732 = vmatpush1.bf16.msra.mxu0 %v588
    %733 = vmatprep.mubr.bf16.mxu0 %v302
    %734 = vmatmul.mubr.bf16.gmra.mrb[0].mxu0 %v301
    %v735 = vpop.f32.mrb[0].mxu0
    %v736 = vadd.f32 0.0, %v735
    %v737 = vpop.f32.mrb[0].mxu0
    %v738 = vpop.f32.mrb[0].mxu0
    %v739 = vadd.f32 0.0, %v738
    %v740 = vpop.f32.mrb[0].mxu0
    %741 = vdwg.mxu0
    %742 = vmatprep.subr.bf16.mxu0 0
    %743 = vmatpush1.bf16.msra.mxu0 %v589
    %744 = vmatprep.subr.bf16.mxu0 0
    %745 = vmatpush1.bf16.msra.mxu0 %v590
    %746 = vmatprep.subr.bf16.mxu0 0
    %747 = vmatpush1.bf16.msra.mxu0 %v591
    %748 = vmatprep.subr.bf16.mxu0 0
    %749 = vmatpush1.bf16.msra.mxu0 %v592
    %750 = vmatprep.subr.bf16.mxu0 0
    %751 = vmatpush1.bf16.msra.mxu0 %v593
    %752 = vmatprep.subr.bf16.mxu0 0
    %753 = vmatpush1.bf16.msra.mxu0 %v594
    %754 = vmatprep.subr.bf16.mxu0 0
    %755 = vmatpush1.bf16.msra.mxu0 %v595
    %756 = vmatprep.subr.bf16.mxu0 0
    %757 = vmatpush1.bf16.msra.mxu0 %v596
    %758 = vmatprep.subr.bf16.mxu0 0
    %759 = vmatpush1.bf16.msra.mxu0 %v597
    %760 = vmatprep.subr.bf16.mxu0 0
    %761 = vmatpush1.bf16.msra.mxu0 %v598
    %762 = vmatprep.subr.bf16.mxu0 0
    %763 = vmatpush1.bf16.msra.mxu0 %v599
    %764 = vmatprep.subr.bf16.mxu0 0
    %765 = vmatpush1.bf16.msra.mxu0 %v600
    %766 = vmatprep.subr.bf16.mxu0 0
    %767 = vmatpush1.bf16.msra.mxu0 %v601
    %768 = vmatprep.subr.bf16.mxu0 0
    %769 = vmatpush1.bf16.msra.mxu0 %v602
    %770 = vmatprep.subr.bf16.mxu0 0
    %771 = vmatpush1.bf16.msra.mxu0 %v603
    %772 = vmatprep.subr.bf16.mxu0 0
    %773 = vmatpush1.bf16.msra.mxu0 %v604
    %774 = vmatprep.mubr.bf16.mxu0 %v304
    %775 = vmatmul.mubr.bf16.gmra.mrb[0].mxu0 %v303
    %v776 = vpop.f32.mrb[0].mxu0
    %v777 = vadd.f32 %v736, %v776
    %v778 = vpop.f32.mrb[0].mxu0
    %v779 = vpop.f32.mrb[0].mxu0
    %v780 = vadd.f32 %v739, %v779
    %v781 = vpop.f32.mrb[0].mxu0
    %782 = vdwg.mxu0
    %783 = vmatprep.subr.bf16.mxu0 0
    %784 = vmatpush1.bf16.msra.mxu0 %v605
    %785 = vmatprep.subr.bf16.mxu0 0
    %786 = vmatpush1.bf16.msra.mxu0 %v606
    %787 = vmatprep.subr.bf16.mxu0 0
    %788 = vmatpush1.bf16.msra.mxu0 %v607
    %789 = vmatprep.subr.bf16.mxu0 0
    %790 = vmatpush1.bf16.msra.mxu0 %v608
    %791 = vmatprep.subr.bf16.mxu0 0
    %792 = vmatpush1.bf16.msra.mxu0 %v609
    %793 = vmatprep.subr.bf16.mxu0 0
    %794 = vmatpush1.bf16.msra.mxu0 %v610
    %795 = vmatprep.subr.bf16.mxu0 0
    %796 = vmatpush1.bf16.msra.mxu0 %v611
    %797 = vmatprep.subr.bf16.mxu0 0
    %798 = vmatpush1.bf16.msra.mxu0 %v612
    %799 = vmatprep.subr.bf16.mxu0 0
    %800 = vmatpush1.bf16.msra.mxu0 %v613
    %801 = vmatprep.subr.bf16.mxu0 0
    %802 = vmatpush1.bf16.msra.mxu0 %v614
    %803 = vmatprep.subr.bf16.mxu0 0
    %804 = vmatpush1.bf16.msra.mxu0 %v615
    %805 = vmatprep.subr.bf16.mxu0 0
    %806 = vmatpush1.bf16.msra.mxu0 %v616
    %807 = vmatprep.subr.bf16.mxu0 0
    %808 = vmatpush1.bf16.msra.mxu0 %v617
    %809 = vmatprep.subr.bf16.mxu0 0
    %810 = vmatpush1.bf16.msra.mxu0 %v618
    %811 = vmatprep.subr.bf16.mxu0 0
    %812 = vmatpush1.bf16.msra.mxu0 %v619
    %813 = vmatprep.subr.bf16.mxu0 0
    %814 = vmatpush1.bf16.msra.mxu0 %v620
    %815 = vmatprep.mubr.bf16.mxu0 %v306
    %816 = vmatmul.mubr.bf16.gmra.mrb[0].mxu0 %v305
    %v817 = vpop.f32.mrb[0].mxu0
    %v818 = vadd.f32 %v777, %v817
    %v819 = vpop.f32.mrb[0].mxu0
    %v820 = vpop.f32.mrb[0].mxu0
    %v821 = vadd.f32 %v780, %v820
    %v822 = vpop.f32.mrb[0].mxu0
    %823 = vdwg.mxu0
    %824 = vmatprep.subr.bf16.mxu0 0
    %825 = vmatpush1.bf16.msra.mxu0 %v621
    %826 = vmatprep.subr.bf16.mxu0 0
    %827 = vmatpush1.bf16.msra.mxu0 %v622
    %828 = vmatprep.subr.bf16.mxu0 0
    %829 = vmatpush1.bf16.msra.mxu0 %v623
    %830 = vmatprep.subr.bf16.mxu0 0
    %831 = vmatpush1.bf16.msra.mxu0 %v624
    %832 = vmatprep.subr.bf16.mxu0 0
    %833 = vmatpush1.bf16.msra.mxu0 %v625
    %834 = vmatprep.subr.bf16.mxu0 0
    %835 = vmatpush1.bf16.msra.mxu0 %v626
    %836 = vmatprep.subr.bf16.mxu0 0
    %837 = vmatpush1.bf16.msra.mxu0 %v627
    %838 = vmatprep.subr.bf16.mxu0 0
    %839 = vmatpush1.bf16.msra.mxu0 %v628
    %840 = vmatprep.subr.bf16.mxu0 0
    %841 = vmatpush1.bf16.msra.mxu0 %v629
    %842 = vmatprep.subr.bf16.mxu0 0
    %843 = vmatpush1.bf16.msra.mxu0 %v630
    %844 = vmatprep.subr.bf16.mxu0 0
    %845 = vmatpush1.bf16.msra.mxu0 %v631
    %846 = vmatprep.subr.bf16.mxu0 0
    %847 = vmatpush1.bf16.msra.mxu0 %v632
    %848 = vmatprep.subr.bf16.mxu0 0
    %849 = vmatpush1.bf16.msra.mxu0 %v633
    %850 = vmatprep.subr.bf16.mxu0 0
    %851 = vmatpush1.bf16.msra.mxu0 %v634
    %852 = vmatprep.subr.bf16.mxu0 0
    %853 = vmatpush1.bf16.msra.mxu0 %v635
    %854 = vmatprep.subr.bf16.mxu0 0
    %855 = vmatpush1.bf16.msra.mxu0 %v636
    %856 = vmatprep.mubr.bf16.mxu0 %v308
    %857 = vmatmul.mubr.bf16.gmra.mrb[0].mxu0 %v307
    %v858 = vpop.f32.mrb[0].mxu0
    %v859 = vadd.f32 %v818, %v858
    %v860 = vpop.f32.mrb[0].mxu0
    %v861 = vpop.f32.mrb[0].mxu0
    %v862 = vadd.f32 %v821, %v861
    %v863 = vpop.f32.mrb[0].mxu0
    %864 = vdwg.mxu0
    %v865 = vrot.slane %v859, 4
    %v866 = vadd.f32 %v859, %v865
    %v867 = vrot.slane %v866, 2
    %v868 = vadd.f32 %v866, %v867
    %v869 = vrot.slane %v868, 1
    %v870 = vadd.f32 %v868, %v869
    %v871 = vrcp.pop 8.0
    %v872 = vmul.f32 %v870, %v871
    %v873 = vsub.f32 %v859, %v872
    %v874 = vmul.f32 %v873, %v873
    %v875 = vrot.slane %v874, 4
    %v876 = vadd.f32 %v874, %v875
    %v877 = vrot.slane %v876, 2
    %v878 = vadd.f32 %v876, %v877
    %v879 = vrot.slane %v878, 1
    %v880 = vadd.f32 %v878, %v879
    %v881 = vmul.f32 %v880, %v871
    %v882 = vadd.f32 %v881, 1e-05
    %v883 = vrsqrt.pop %v882
    %v884 = vmul.f32 %v873, %v883
    %v886 = vlaneseq
    %v887 = vshrl.u32 %v886, 7
    %v888 = vsub.s32 0, %v887
    %v889 = vrot.slane %v145, %v888
    %v891 = vmul.f32 %v884, %v889
    %v893 = vlaneseq
    %v894 = vshrl.u32 %v893, 7
    %v895 = vsub.s32 0, %v894
    %v896 = vrot.slane %v146, %v895
    %v898 = vadd.f32 %v891, %v896
    %v899 = vmax.f32 %v898, 0.0
    %v900 = vrot.slane %v862, 4
    %v901 = vadd.f32 %v862, %v900
    %v902 = vrot.slane %v901, 2
    %v903 = vadd.f32 %v901, %v902
    %v904 = vrot.slane %v903, 1
    %v905 = vadd.f32 %v903, %v904
    %v906 = vmul.f32 %v905, %v871
    %v907 = vsub.f32 %v862, %v906
    %v908 = vmul.f32 %v907, %v907
    %v909 = vrot.slane %v908, 4
    %v910 = vadd.f32 %v908, %v909
    %v911 = vrot.slane %v910, 2
    %v912 = vadd.f32 %v910, %v911
    %v913 = vrot.slane %v912, 1
    %v914 = vadd.f32 %v912, %v913
    %v915 = vmul.f32 %v914, %v871
    %v916 = vadd.f32 %v915, 1e-05
    %v917 = vrsqrt.pop %v916
    %v918 = vmul.f32 %v907, %v917
    %v919 = vmul.f32 %v918, %v889
    %v920 = vadd.f32 %v919, %v896
    %v921 = vmax.f32 %v920, 0.0
    %v922 = vpack.c.bf16 %v921, %v899
    %v923 = vld [vmem:[#allocation10] sm:$0xf]
    %v924 = vld [vmem:[#allocation10 + $0x4] sm:$0xf]
    %v925 = vld [vmem:[#allocation10 + $0x8] sm:$0xf]
    %v926 = vld [vmem:[#allocation10 + $0xc] sm:$0xf]
    %v927 = vld [vmem:[#allocation10 + $0x10] sm:$0xf]
    %v928 = vld [vmem:[#allocation10 + $0x14] sm:$0xf]
    %v929 = vld [vmem:[#allocation10 + $0x18] sm:$0xf]
    %v930 = vld [vmem:[#allocation10 + $0x1c] sm:$0xf]
    %v931 = vld [vmem:[#allocation10 + $0x20] sm:$0xf]
    %v932 = vld [vmem:[#allocation10 + $0x24] sm:$0xf]
    %v933 = vld [vmem:[#allocation10 + $0x28] sm:$0xf]
    %v934 = vld [vmem:[#allocation10 + $0x2c] sm:$0xf]
    %v935 = vld [vmem:[#allocation10 + $0x30] sm:$0xf]
    %v936 = vld [vmem:[#allocation10 + $0x34] sm:$0xf]
    %v937 = vld [vmem:[#allocation10 + $0x38] sm:$0xf]
    %v938 = vld [vmem:[#allocation10 + $0x3c] sm:$0xf]
    %v955 = vunpack.c.l.b16 %v923
    %v956 = vunpack.c.l.b16 %v924
    %v957 = vunpack.c.l.b16 %v925
    %v958 = vunpack.c.l.b16 %v926
    %v959 = vunpack.c.l.b16 %v927
    %v960 = vunpack.c.l.b16 %v928
    %v961 = vunpack.c.l.b16 %v929
    %v962 = vunpack.c.l.b16 %v930
    %v963 = vunpack.c.l.b16 %v931
    %v964 = vunpack.c.l.b16 %v932
    %v965 = vunpack.c.l.b16 %v933
    %v966 = vunpack.c.l.b16 %v934
    %v967 = vunpack.c.l.b16 %v935
    %v968 = vunpack.c.l.b16 %v936
    %v969 = vunpack.c.l.b16 %v937
    %v970 = vunpack.c.l.b16 %v938
    %v971 = vpack.c.b16 %v956, %v955
    %v972 = vpack.c.b16 %v958, %v957
    %v973 = vpack.c.b16 %v960, %v959
    %v974 = vpack.c.b16 %v962, %v961
    %v975 = vpack.c.b16 %v964, %v963
    %v976 = vpack.c.b16 %v966, %v965
    %v977 = vpack.c.b16 %v968, %v967
    %v978 = vpack.c.b16 %v970, %v969
    %987 = vmatprep.subr.bf16.mxu0 0
    %988 = vmatpush1.bf16.msra.mxu0 %v971
    %989 = vmatprep.subr.bf16.mxu0 0
    %990 = vmatpush1.bf16.msra.mxu0 %v972
    %991 = vmatprep.subr.bf16.mxu0 0
    %992 = vmatpush1.bf16.msra.mxu0 %v973
    %993 = vmatprep.subr.bf16.mxu0 0
    %994 = vmatpush1.bf16.msra.mxu0 %v974
    %995 = vmatprep.subr.bf16.mxu0 0
    %996 = vmatpush1.bf16.msra.mxu0 %v975
    %997 = vmatprep.subr.bf16.mxu0 0
    %998 = vmatpush1.bf16.msra.mxu0 %v976
    %999 = vmatprep.subr.bf16.mxu0 0
    %1000 = vmatpush1.bf16.msra.mxu0 %v977
    %1001 = vmatprep.subr.bf16.mxu0 0
    %1002 = vmatpush1.bf16.msra.mxu0 %v978
    %1003 = vmatprep.subr.bf16.mxu0 0
    %1004 = vmatpush1.bf16.msra.mxu0 0
    %1005 = vmatprep.subr.bf16.mxu0 0
    %1006 = vmatpush1.bf16.msra.mxu0 0
    %1007 = vmatprep.subr.bf16.mxu0 0
    %1008 = vmatpush1.bf16.msra.mxu0 0
    %1009 = vmatprep.subr.bf16.mxu0 0
    %1010 = vmatpush1.bf16.msra.mxu0 0
    %1011 = vmatprep.subr.bf16.mxu0 0
    %1012 = vmatpush1.bf16.msra.mxu0 0
    %1013 = vmatprep.subr.bf16.mxu0 0
    %1014 = vmatpush1.bf16.msra.mxu0 0
    %1015 = vmatprep.subr.bf16.mxu0 0
    %1016 = vmatpush1.bf16.msra.mxu0 0
    %1017 = vmatprep.subr.bf16.mxu0 0
    %1018 = vmatpush1.bf16.msra.mxu0 0
    %1019 = vmatprep.mubr.bf16.mxu0 0
    %1020 = vmatmul.mubr.bf16.gmra.mrb[0].mxu0 %v922
    %v1021 = vpop.f32.mrb[0].mxu0
    %v1022 = vadd.f32 0.0, %v1021
    %v1023 = vpop.f32.mrb[0].mxu0
    %v1024 = vpop.f32.mrb[0].mxu0
    %v1025 = vadd.f32 0.0, %v1024
    %v1026 = vpop.f32.mrb[0].mxu0
    %1027 = vdwg.mxu0
    %v1028 = vrot.slane %v1022, 4
    %v1029 = vadd.f32 %v1022, %v1028
    %v1030 = vrot.slane %v1029, 2
    %v1031 = vadd.f32 %v1029, %v1030
    %v1032 = vrot.slane %v1031, 1
    %v1033 = vadd.f32 %v1031, %v1032
    %v1034 = vmul.f32 %v1033, %v871
    %v1035 = vsub.f32 %v1022, %v1034
    %v1036 = vmul.f32 %v1035, %v1035
    %v1037 = vrot.slane %v1036, 4
    %v1038 = vadd.f32 %v1036, %v1037
    %v1039 = vrot.slane %v1038, 2
    %v1040 = vadd.f32 %v1038, %v1039
    %v1041 = vrot.slane %v1040, 1
    %v1042 = vadd.f32 %v1040, %v1041
    %v1043 = vmul.f32 %v1042, %v871
    %v1044 = vadd.f32 %v1043, 1e-05
    %v1045 = vrsqrt.pop %v1044
    %v1046 = vmul.f32 %v1035, %v1045
    %v1048 = vlaneseq
    %v1049 = vshrl.u32 %v1048, 7
    %v1050 = vsub.s32 0, %v1049
    %v1051 = vrot.slane %v147, %v1050
    %v1053 = vmul.f32 %v1046, %v1051
    %v1055 = vlaneseq
    %v1056 = vshrl.u32 %v1055, 7
    %v1057 = vsub.s32 0, %v1056
    %v1058 = vrot.slane %v148, %v1057
    %v1060 = vadd.f32 %v1053, %v1058
    %v1061 = vmax.f32 %v1060, 0.0
    %v1062 = vrot.slane %v1025, 4
    %v1063 = vadd.f32 %v1025, %v1062
    %v1064 = vrot.slane %v1063, 2
    %v1065 = vadd.f32 %v1063, %v1064
    %v1066 = vrot.slane %v1065, 1
    %v1067 = vadd.f32 %v1065, %v1066
    %v1068 = vmul.f32 %v1067, %v871
    %v1069 = vsub.f32 %v1025, %v1068
    %v1070 = vmul.f32 %v1069, %v1069
    %v1071 = vrot.slane %v1070, 4
    %v1072 = vadd.f32 %v1070, %v1071
    %v1073 = vrot.slane %v1072, 2
    %v1074 = vadd.f32 %v1072, %v1073
    %v1075 = vrot.slane %v1074, 1
    %v1076 = vadd.f32 %v1074, %v1075
    %v1077 = vmul.f32 %v1076, %v871
    %v1078 = vadd.f32 %v1077, 1e-05
    %v1079 = vrsqrt.pop %v1078
    %v1080 = vmul.f32 %v1069, %v1079
    %v1081 = vmul.f32 %v1080, %v1051
    %v1082 = vadd.f32 %v1081, %v1058
    %v1083 = vmax.f32 %v1082, 0.0
    %v1084 = vpack.c.bf16 %v1083, %v1061
    %v1085 = vld [vmem:[#allocation11] sm:$0xf]
    %v1086 = vld [vmem:[#allocation11 + $0x4] sm:$0xf]
    %v1087 = vld [vmem:[#allocation11 + $0x8] sm:$0xf]
    %v1088 = vld [vmem:[#allocation11 + $0xc] sm:$0xf]
    %v1089 = vld [vmem:[#allocation11 + $0x10] sm:$0xf]
    %v1090 = vld [vmem:[#allocation11 + $0x14] sm:$0xf]
    %v1091 = vld [vmem:[#allocation11 + $0x18] sm:$0xf]
    %v1092 = vld [vmem:[#allocation11 + $0x1c] sm:$0xf]
    %v1093 = vld [vmem:[#allocation11 + $0x20] sm:$0xf]
    %v1094 = vld [vmem:[#allocation11 + $0x24] sm:$0xf]
    %v1095 = vld [vmem:[#allocation11 + $0x28] sm:$0xf]
    %v1096 = vld [vmem:[#allocation11 + $0x2c] sm:$0xf]
    %v1097 = vld [vmem:[#allocation11 + $0x30] sm:$0xf]
    %v1098 = vld [vmem:[#allocation11 + $0x34] sm:$0xf]
    %v1099 = vld [vmem:[#allocation11 + $0x38] sm:$0xf]
    %v1100 = vld [vmem:[#allocation11 + $0x3c] sm:$0xf]
    %v1117 = vunpack.c.l.b16 %v1085
    %v1118 = vunpack.c.l.b16 %v1086
    %v1119 = vunpack.c.l.b16 %v1087
    %v1120 = vunpack.c.l.b16 %v1088
    %v1121 = vunpack.c.l.b16 %v1089
    %v1122 = vunpack.c.l.b16 %v1090
    %v1123 = vunpack.c.l.b16 %v1091
    %v1124 = vunpack.c.l.b16 %v1092
    %v1125 = vunpack.c.l.b16 %v1093
    %v1126 = vunpack.c.l.b16 %v1094
    %v1127 = vunpack.c.l.b16 %v1095
    %v1128 = vunpack.c.l.b16 %v1096
    %v1129 = vunpack.c.l.b16 %v1097
    %v1130 = vunpack.c.l.b16 %v1098
    %v1131 = vunpack.c.l.b16 %v1099
    %v1132 = vunpack.c.l.b16 %v1100
    %v1133 = vpack.c.b16 %v1118, %v1117
    %v1134 = vpack.c.b16 %v1120, %v1119
    %v1135 = vpack.c.b16 %v1122, %v1121
    %v1136 = vpack.c.b16 %v1124, %v1123
    %v1137 = vpack.c.b16 %v1126, %v1125
    %v1138 = vpack.c.b16 %v1128, %v1127
    %v1139 = vpack.c.b16 %v1130, %v1129
    %v1140 = vpack.c.b16 %v1132, %v1131
    %1149 = vmatprep.subr.bf16.mxu0 0
    %1150 = vmatpush1.bf16.msra.mxu0 %v1133
    %1151 = vmatprep.subr.bf16.mxu0 0
    %1152 = vmatpush1.bf16.msra.mxu0 %v1134
    %1153 = vmatprep.subr.bf16.mxu0 0
    %1154 = vmatpush1.bf16.msra.mxu0 %v1135
    %1155 = vmatprep.subr.bf16.mxu0 0
    %1156 = vmatpush1.bf16.msra.mxu0 %v1136
    %1157 = vmatprep.subr.bf16.mxu0 0
    %1158 = vmatpush1.bf16.msra.mxu0 %v1137
    %1159 = vmatprep.subr.bf16.mxu0 0
    %1160 = vmatpush1.bf16.msra.mxu0 %v1138
    %1161 = vmatprep.subr.bf16.mxu0 0
    %1162 = vmatpush1.bf16.msra.mxu0 %v1139
    %1163 = vmatprep.subr.bf16.mxu0 0
    %1164 = vmatpush1.bf16.msra.mxu0 %v1140
    %1165 = vmatprep.subr.bf16.mxu0 0
    %1166 = vmatpush1.bf16.msra.mxu0 0
    %1167 = vmatprep.subr.bf16.mxu0 0
    %1168 = vmatpush1.bf16.msra.mxu0 0
    %1169 = vmatprep.subr.bf16.mxu0 0
    %1170 = vmatpush1.bf16.msra.mxu0 0
    %1171 = vmatprep.subr.bf16.mxu0 0
    %1172 = vmatpush1.bf16.msra.mxu0 0
    %1173 = vmatprep.subr.bf16.mxu0 0
    %1174 = vmatpush1.bf16.msra.mxu0 0
    %1175 = vmatprep.subr.bf16.mxu0 0
    %1176 = vmatpush1.bf16.msra.mxu0 0
    %1177 = vmatprep.subr.bf16.mxu0 0
    %1178 = vmatpush1.bf16.msra.mxu0 0
    %1179 = vmatprep.subr.bf16.mxu0 0
    %1180 = vmatpush1.bf16.msra.mxu0 0
    %1181 = vmatprep.mubr.bf16.mxu0 0
    %1182 = vmatmul.mubr.bf16.gmra.mrb[0].mxu0 %v1084
    %v1183 = vpop.f32.mrb[0].mxu0
    %v1184 = vadd.f32 0.0, %v1183
    %v1185 = vpop.f32.mrb[0].mxu0
    %v1186 = vpop.f32.mrb[0].mxu0
    %v1187 = vadd.f32 0.0, %v1186
    %v1188 = vpop.f32.mrb[0].mxu0
    %1189 = vdwg.mxu0
    %v1190 = vld [vmem:[#allocation7] sm:$0xff]
    %v1191 = vmul.f32 %v1187, %v1190
    %1192 = vst [vmem:[#allocation13] sm:$0xff] %v1184
    %1193 = vst [vmem:[#allocation14] sm:$0xff] %v1191
    %v1194 = vrot.slane %v1184, 4
    %v1195 = vadd.f32 %v1184, %v1194
    %v1196 = vrot.slane %v1195, 2
    %v1197 = vadd.f32 %v1195, %v1196
    %v1198 = vrot.slane %v1197, 1
    %v1199 = vadd.f32 %v1197, %v1198
    %v1200 = vmul.f32 %v1199, %v871
    %v1201 = vsub.f32 %v1184, %v1200
    %v1202 = vmul.f32 %v1201, %v1201
    %v1203 = vrot.slane %v1202, 4
    %v1204 = vadd.f32 %v1202, %v1203
    %v1205 = vrot.slane %v1204, 2
    %v1206 = vadd.f32 %v1204, %v1205
    %v1207 = vrot.slane %v1206, 1
    %v1208 = vadd.f32 %v1206, %v1207
    %v1209 = vmul.f32 %v1208, %v871
    %v1210 = vadd.f32 %v1209, 1e-05
    %v1211 = vrsqrt.pop %v1210
    %v1212 = vmul.f32 %v1201, %v1211
    %v1213 = vrot.slane %v1191, 4
    %v1214 = vadd.f32 %v1191, %v1213
    %v1215 = vrot.slane %v1214, 2
    %v1216 = vadd.f32 %v1214, %v1215
    %v1217 = vrot.slane %v1216, 1
    %v1218 = vadd.f32 %v1216, %v1217
    %v1219 = vmul.f32 %v1218, %v871
    %v1220 = vsub.f32 %v1191, %v1219
    %v1221 = vmul.f32 %v1220, %v1220
    %v1222 = vrot.slane %v1221, 4
    %v1223 = vadd.f32 %v1221, %v1222
    %v1224 = vrot.slane %v1223, 2
    %v1225 = vadd.f32 %v1223, %v1224
    %v1226 = vrot.slane %v1225, 1
    %v1227 = vadd.f32 %v1225, %v1226
    %v1228 = vmul.f32 %v1227, %v871
    %v1229 = vadd.f32 %v1228, 1e-05
    %v1230 = vrsqrt.pop %v1229
    %v1231 = vmul.f32 %v1220, %v1230
    %1232 = vxpose.xlu0.b32.start [1/16] %v1212, 128
    %1233 = vxpose.xlu0.b32.cont [2/16] 0.0, 128
    %1234 = vxpose.xlu0.b32.cont [3/16] 0.0, 128
    %1235 = vxpose.xlu0.b32.cont [4/16] 0.0, 128
    %1236 = vxpose.xlu0.b32.cont [5/16] 0.0, 128
    %1237 = vxpose.xlu0.b32.cont [6/16] 0.0, 128
    %1238 = vxpose.xlu0.b32.cont [7/16] 0.0, 128
    %1239 = vxpose.xlu0.b32.cont [8/16] 0.0, 128
    %1240 = vxpose.xlu0.b32.cont [9/16] 0.0, 128
    %1241 = vxpose.xlu0.b32.cont [10/16] 0.0, 128
    %1242 = vxpose.xlu0.b32.cont [11/16] 0.0, 128
    %1243 = vxpose.xlu0.b32.cont [12/16] 0.0, 128
    %1244 = vxpose.xlu0.b32.cont [13/16] 0.0, 128
    %1245 = vxpose.xlu0.b32.cont [14/16] 0.0, 128
    %1246 = vxpose.xlu0.b32.cont [15/16] 0.0, 128
    %1247 = vxpose.xlu0.b32.end [16/16] 0.0, 128
    %v1248 = vpop.trf.xlu0
    %v1249 = vpop.trf.xlu0
    %v1250 = vpop.trf.xlu0
    %v1251 = vpop.trf.xlu0
    %v1252 = vpop.trf.xlu0
    %v1253 = vpop.trf.xlu0
    %v1254 = vpop.trf.xlu0
    %v1255 = vpop.trf.xlu0
    %v1256 = vpop.trf.xlu0
    %v1257 = vpop.trf.xlu0
    %v1258 = vpop.trf.xlu0
    %v1259 = vpop.trf.xlu0
    %v1260 = vpop.trf.xlu0
    %v1261 = vpop.trf.xlu0
    %v1262 = vpop.trf.xlu0
    %v1263 = vpop.trf.xlu0
    %vm1264 = vcmask 64512
    %v1266 = vsel %vm1264, %v1248, 0
    %v1269 = vsel %vm1264, %v1249, 0
    %v1272 = vsel %vm1264, %v1250, 0
    %v1275 = vsel %vm1264, %v1251, 0
    %v1278 = vsel %vm1264, %v1252, 0
    %v1281 = vsel %vm1264, %v1253, 0
    %v1284 = vsel %vm1264, %v1254, 0
    %v1287 = vsel %vm1264, %v1255, 0
    %v1290 = vsel %vm1264, %v1256, 0
    %v1293 = vsel %vm1264, %v1257, 0
    %v1296 = vsel %vm1264, %v1258, 0
    %v1299 = vsel %vm1264, %v1259, 0
    %v1302 = vsel %vm1264, %v1260, 0
    %v1305 = vsel %vm1264, %v1261, 0
    %v1308 = vsel %vm1264, %v1262, 0
    %v1311 = vsel %vm1264, %v1263, 0
    %1313 = vmatprep.subr.mxu0 0.0
    %1314 = vmatpush1.msra.mxu0 %v1231
    %1315 = vmatprep.subr.mxu0 0.0
    %1316 = vmatpush1.msra.mxu0 0.0
    %1317 = vmatprep.subr.mxu0 0.0
    %1318 = vmatpush1.msra.mxu0 0.0
    %1319 = vmatprep.subr.mxu0 0.0
    %1320 = vmatpush1.msra.mxu0 0.0
    %1321 = vmatprep.subr.mxu0 0.0
    %1322 = vmatpush1.msra.mxu0 0.0
    %1323 = vmatprep.subr.mxu0 0.0
    %1324 = vmatpush1.msra.mxu0 0.0
    %1325 = vmatprep.subr.mxu0 0.0
    %1326 = vmatpush1.msra.mxu0 0.0
    %1327 = vmatprep.subr.mxu0 0.0
    %1328 = vmatpush1.msra.mxu0 0.0
    %1329 = vmatprep.subr.mxu0 0.0
    %1330 = vmatpush1.msra.mxu0 0.0
    %1331 = vmatprep.subr.mxu0 0.0
    %1332 = vmatpush1.msra.mxu0 0.0
    %1333 = vmatprep.subr.mxu0 0.0
    %1334 = vmatpush1.msra.mxu0 0.0
    %1335 = vmatprep.subr.mxu0 0.0
    %1336 = vmatpush1.msra.mxu0 0.0
    %1337 = vmatprep.subr.mxu0 0.0
    %1338 = vmatpush1.msra.mxu0 0.0
    %1339 = vmatprep.subr.mxu0 0.0
    %1340 = vmatpush1.msra.mxu0 0.0
    %1341 = vmatprep.subr.mxu0 0.0
    %1342 = vmatpush1.msra.mxu0 0.0
    %1343 = vmatprep.subr.mxu0 0.0
    %1344 = vmatpush1.msra.mxu0 0.0
    %1345 = vmatprep.subr.mxu0 0.0
    %1346 = vmatpush1.msra.mxu0 0.0
    %1347 = vmatprep.subr.mxu0 0.0
    %1348 = vmatpush1.msra.mxu0 0.0
    %1349 = vmatprep.subr.mxu0 0.0
    %1350 = vmatpush1.msra.mxu0 0.0
    %1351 = vmatprep.subr.mxu0 0.0
    %1352 = vmatpush1.msra.mxu0 0.0
    %1353 = vmatprep.subr.mxu0 0.0
    %1354 = vmatpush1.msra.mxu0 0.0
    %1355 = vmatprep.subr.mxu0 0.0
    %1356 = vmatpush1.msra.mxu0 0.0
    %1357 = vmatprep.subr.mxu0 0.0
    %1358 = vmatpush1.msra.mxu0 0.0
    %1359 = vmatprep.subr.mxu0 0.0
    %1360 = vmatpush1.msra.mxu0 0.0
    %1361 = vmatprep.subr.mxu0 0.0
    %1362 = vmatpush1.msra.mxu0 0.0
    %1363 = vmatprep.subr.mxu0 0.0
    %1364 = vmatpush1.msra.mxu0 0.0
    %1365 = vmatprep.subr.mxu0 0.0
    %1366 = vmatpush1.msra.mxu0 0.0
    %1367 = vmatprep.subr.mxu0 0.0
    %1368 = vmatpush1.msra.mxu0 0.0
    %1369 = vmatprep.subr.mxu0 0.0
    %1370 = vmatpush1.msra.mxu0 0.0
    %1371 = vmatprep.subr.mxu0 0.0
    %1372 = vmatpush1.msra.mxu0 0.0
    %1373 = vmatprep.subr.mxu0 0.0
    %1374 = vmatpush1.msra.mxu0 0.0
    %1375 = vmatprep.subr.mxu0 0.0
    %1376 = vmatpush1.msra.mxu0 0.0
    %1377 = vmatprep.mubr.f32.mxu0 0.0
    %1378 = vmatmul.mubr.f32.gmra.mrb[0].mxu0 %v1266
    %v1379 = vpop.f32.mrb[0].mxu0
    %v1380 = vadd.f32 0.0, %v1379
    %v1381 = vpop.f32.mrb[0].mxu0
    %1382 = vmatprep.mubr.f32.mxu0 0.0
    %1383 = vmatmul.mubr.f32.gmra.mrb[0].mxu0 %v1269
    %v1384 = vpop.f32.mrb[0].mxu0
    %v1385 = vadd.f32 0.0, %v1384
    %v1386 = vpop.f32.mrb[0].mxu0
    %1387 = vmatprep.mubr.f32.mxu0 0.0
    %1388 = vmatmul.mubr.f32.gmra.mrb[0].mxu0 %v1272
    %v1389 = vpop.f32.mrb[0].mxu0
    %v1390 = vadd.f32 0.0, %v1389
    %v1391 = vpop.f32.mrb[0].mxu0
    %1392 = vmatprep.mubr.f32.mxu0 0.0
    %1393 = vmatmul.mubr.f32.gmra.mrb[0].mxu0 %v1275
    %v1394 = vpop.f32.mrb[0].mxu0
    %v1395 = vadd.f32 0.0, %v1394
    %v1396 = vpop.f32.mrb[0].mxu0
    %1397 = vmatprep.mubr.f32.mxu0 0.0
    %1398 = vmatmul.mubr.f32.gmra.mrb[0].mxu0 %v1278
    %v1399 = vpop.f32.mrb[0].mxu0
    %v1400 = vadd.f32 0.0, %v1399
    %v1401 = vpop.f32.mrb[0].mxu0
    %1402 = vmatprep.mubr.f32.mxu0 0.0
    %1403 = vmatmul.mubr.f32.gmra.mrb[0].mxu0 %v1281
    %v1404 = vpop.f32.mrb[0].mxu0
    %v1405 = vadd.f32 0.0, %v1404
    %v1406 = vpop.f32.mrb[0].mxu0
    %1407 = vmatprep.mubr.f32.mxu0 0.0
    %1408 = vmatmul.mubr.f32.gmra.mrb[0].mxu0 %v1284
    %v1409 = vpop.f32.mrb[0].mxu0
    %v1410 = vadd.f32 0.0, %v1409
    %v1411 = vpop.f32.mrb[0].mxu0
    %1412 = vmatprep.mubr.f32.mxu0 0.0
    %1413 = vmatmul.mubr.f32.gmra.mrb[0].mxu0 %v1287
    %v1414 = vpop.f32.mrb[0].mxu0
    %v1415 = vadd.f32 0.0, %v1414
    %v1416 = vpop.f32.mrb[0].mxu0
    %1417 = vmatprep.mubr.f32.mxu0 0.0
    %1418 = vmatmul.mubr.f32.gmra.mrb[0].mxu0 %v1290
    %v1419 = vpop.f32.mrb[0].mxu0
    %v1420 = vadd.f32 0.0, %v1419
    %v1421 = vpop.f32.mrb[0].mxu0
    %1422 = vmatprep.mubr.f32.mxu0 0.0
    %1423 = vmatmul.mubr.f32.gmra.mrb[0].mxu0 %v1293
    %v1424 = vpop.f32.mrb[0].mxu0
    %v1425 = vadd.f32 0.0, %v1424
    %v1426 = vpop.f32.mrb[0].mxu0
    %1427 = vmatprep.mubr.f32.mxu0 0.0
    %1428 = vmatmul.mubr.f32.gmra.mrb[0].mxu0 %v1296
    %v1429 = vpop.f32.mrb[0].mxu0
    %v1430 = vadd.f32 0.0, %v1429
    %v1431 = vpop.f32.mrb[0].mxu0
    %1432 = vmatprep.mubr.f32.mxu0 0.0
    %1433 = vmatmul.mubr.f32.gmra.mrb[0].mxu0 %v1299
    %v1434 = vpop.f32.mrb[0].mxu0
    %v1435 = vadd.f32 0.0, %v1434
    %v1436 = vpop.f32.mrb[0].mxu0
    %1437 = vmatprep.mubr.f32.mxu0 0.0
    %1438 = vmatmul.mubr.f32.gmra.mrb[0].mxu0 %v1302
    %v1439 = vpop.f32.mrb[0].mxu0
    %v1440 = vadd.f32 0.0, %v1439
    %v1441 = vpop.f32.mrb[0].mxu0
    %1442 = vmatprep.mubr.f32.mxu0 0.0
    %1443 = vmatmul.mubr.f32.gmra.mrb[0].mxu0 %v1305
    %v1444 = vpop.f32.mrb[0].mxu0
    %v1445 = vadd.f32 0.0, %v1444
    %v1446 = vpop.f32.mrb[0].mxu0
    %1447 = vmatprep.mubr.f32.mxu0 0.0
    %1448 = vmatmul.mubr.f32.gmra.mrb[0].mxu0 %v1308
    %v1449 = vpop.f32.mrb[0].mxu0
    %v1450 = vadd.f32 0.0, %v1449
    %v1451 = vpop.f32.mrb[0].mxu0
    %1452 = vmatprep.mubr.f32.mxu0 0.0
    %1453 = vmatmul.mubr.f32.gmra.mrb[0].mxu0 %v1311
    %v1454 = vpop.f32.mrb[0].mxu0
    %v1455 = vadd.f32 0.0, %v1454
    %v1456 = vpop.f32.mrb[0].mxu0
    %1457 = vdwg.mxu0
    %v1458 = vmul.f32 %v1380, 0.125
    %v1459 = vmul.f32 %v1385, 0.125
    %v1460 = vmul.f32 %v1390, 0.125
    %v1461 = vmul.f32 %v1395, 0.125
    %v1462 = vmul.f32 %v1400, 0.125
    %v1463 = vmul.f32 %v1405, 0.125
    %v1464 = vmul.f32 %v1410, 0.125
    %v1465 = vmul.f32 %v1415, 0.125
    %v1466 = vmul.f32 %v1420, 0.125
    %v1467 = vmul.f32 %v1425, 0.125
    %v1468 = vmul.f32 %v1430, 0.125
    %v1469 = vmul.f32 %v1435, 0.125
    %v1470 = vmul.f32 %v1440, 0.125
    %v1471 = vmul.f32 %v1445, 0.125
    %v1472 = vmul.f32 %v1450, 0.125
    %v1473 = vmul.f32 %v1455, 0.125
    %v1474 = vlaneseq
    %v1475 = vshrl.u32 %v1474, 7
    %v1476 = vadd.s32 %v1475, 8
    %v1477 = vadd.s32 %v1475, 16
    %v1478 = vadd.s32 %v1475, 24
    %v1479 = vadd.s32 %v1475, 32
    %v1480 = vadd.s32 %v1475, 40
    %v1481 = vadd.s32 %v1475, 48
    %v1482 = vadd.s32 %v1475, 56
    %v1483 = vadd.s32 %v1475, 64
    %v1484 = vadd.s32 %v1475, 72
    %v1485 = vadd.s32 %v1475, 80
    %v1486 = vadd.s32 %v1475, 88
    %v1487 = vadd.s32 %v1475, 96
    %v1488 = vadd.s32 %v1475, 104
    %v1489 = vadd.s32 %v1475, 112
    %v1490 = vadd.s32 %v1475, 120
    %v1491 = vlaneseq
    %v1492 = vand.u32 %v1491, 127
    %vm1493 = vcmp.eq.s32.totalorder %v1475, %v1492
    %vm1494 = vcmp.eq.s32.totalorder %v1476, %v1492
    %vm1495 = vcmp.eq.s32.totalorder %v1477, %v1492
    %vm1496 = vcmp.eq.s32.totalorder %v1478, %v1492
    %vm1497 = vcmp.eq.s32.totalorder %v1479, %v1492
    %vm1498 = vcmp.eq.s32.totalorder %v1480, %v1492
    %vm1499 = vcmp.eq.s32.totalorder %v1481, %v1492
    %vm1500 = vcmp.eq.s32.totalorder %v1482, %v1492
    %vm1501 = vcmp.eq.s32.totalorder %v1483, %v1492
    %vm1502 = vcmp.eq.s32.totalorder %v1484, %v1492
    %vm1503 = vcmp.eq.s32.totalorder %v1485, %v1492
    %vm1504 = vcmp.eq.s32.totalorder %v1486, %v1492
    %vm1505 = vcmp.eq.s32.totalorder %v1487, %v1492
    %vm1506 = vcmp.eq.s32.totalorder %v1488, %v1492
    %vm1507 = vcmp.eq.s32.totalorder %v1489, %v1492
    %vm1508 = vcmp.eq.s32.totalorder %v1490, %v1492
    %v1509 = vsel %vm1493, %v1458, 0.0
    %v1510 = vsel %vm1494, %v1459, 0.0
    %v1511 = vsel %vm1495, %v1460, 0.0
    %v1512 = vsel %vm1496, %v1461, 0.0
    %v1513 = vsel %vm1497, %v1462, 0.0
    %v1514 = vsel %vm1498, %v1463, 0.0
    %v1515 = vsel %vm1499, %v1464, 0.0
    %v1516 = vsel %vm1500, %v1465, 0.0
    %v1517 = vsel %vm1501, %v1466, 0.0
    %v1518 = vsel %vm1502, %v1467, 0.0
    %v1519 = vsel %vm1503, %v1468, 0.0
    %v1520 = vsel %vm1504, %v1469, 0.0
    %v1521 = vsel %vm1505, %v1470, 0.0
    %v1522 = vsel %vm1506, %v1471, 0.0
    %v1523 = vsel %vm1507, %v1472, 0.0
    %v1524 = vsel %vm1508, %v1473, 0.0
    %v1525 = vadd.f32 %v1509, %v1510
    %v1526 = vadd.f32 %v1525, %v1511
    %v1527 = vadd.f32 %v1526, %v1512
    %v1528 = vadd.f32 %v1527, %v1513
    %v1529 = vadd.f32 %v1528, %v1514
    %v1530 = vadd.f32 %v1529, %v1515
    %v1531 = vadd.f32 %v1530, %v1516
    %v1532 = vadd.f32 %v1531, %v1517
    %v1533 = vadd.f32 %v1532, %v1518
    %v1534 = vadd.f32 %v1533, %v1519
    %v1535 = vadd.f32 %v1534, %v1520
    %v1536 = vadd.f32 %v1535, %v1521
    %v1537 = vadd.f32 %v1536, %v1522
    %v1538 = vadd.f32 %v1537, %v1523
    %v1539 = vadd.f32 %v1538, %v1524
    %1540 = vadd.xlane.f32.xlu0 %v1539
    %v1541 = vpop.xlane.xlu0 %1540
    %v1542 = vrot.slane %v1541, 4
    %v1543 = vadd.f32 %v1541, %v1542
    %v1544 = vrot.slane %v1543, 2
    %v1545 = vadd.f32 %v1543, %v1544
    %v1546 = vrot.slane %v1545, 1
    %v1547 = vadd.f32 %v1545, %v1546
    %s1548 = vtos %v1547
    %v1549 = vmul.f32 %v1509, %v1509
    %v1550 = vmul.f32 %v1510, %v1510
    %v1551 = vmul.f32 %v1511, %v1511
    %v1552 = vmul.f32 %v1512, %v1512
    %v1553 = vmul.f32 %v1513, %v1513
    %v1554 = vmul.f32 %v1514, %v1514
    %v1555 = vmul.f32 %v1515, %v1515
    %v1556 = vmul.f32 %v1516, %v1516
    %v1557 = vmul.f32 %v1517, %v1517
    %v1558 = vmul.f32 %v1518, %v1518
    %v1559 = vmul.f32 %v1519, %v1519
    %v1560 = vmul.f32 %v1520, %v1520
    %v1561 = vmul.f32 %v1521, %v1521
    %v1562 = vmul.f32 %v1522, %v1522
    %v1563 = vmul.f32 %v1523, %v1523
    %v1564 = vmul.f32 %v1524, %v1524
    %v1565 = vadd.f32 %v1549, %v1550
    %v1566 = vadd.f32 %v1565, %v1551
    %v1567 = vadd.f32 %v1566, %v1552
    %v1568 = vadd.f32 %v1567, %v1553
    %v1569 = vadd.f32 %v1568, %v1554
    %v1570 = vadd.f32 %v1569, %v1555
    %v1571 = vadd.f32 %v1570, %v1556
    %v1572 = vadd.f32 %v1571, %v1557
    %v1573 = vadd.f32 %v1572, %v1558
    %v1574 = vadd.f32 %v1573, %v1559
    %v1575 = vadd.f32 %v1574, %v1560
    %v1576 = vadd.f32 %v1575, %v1561
    %v1577 = vadd.f32 %v1576, %v1562
    %v1578 = vadd.f32 %v1577, %v1563
    %v1579 = vadd.f32 %v1578, %v1564
    %1580 = vadd.xlane.f32.xlu0 %v1579
    %v1581 = vpop.xlane.xlu0 %1580
    %v1582 = vrot.slane %v1581, 4
    %v1583 = vadd.f32 %v1581, %v1582
    %v1584 = vrot.slane %v1583, 2
    %v1585 = vadd.f32 %v1583, %v1584
    %v1586 = vrot.slane %v1585, 1
    %v1587 = vadd.f32 %v1585, %v1586
    %s1588 = vtos %v1587
    %v1589 = vmul.f32 %v1458, %v1458
    %v1590 = vmul.f32 %v1459, %v1459
    %v1591 = vmul.f32 %v1460, %v1460
    %v1592 = vmul.f32 %v1461, %v1461
    %v1593 = vmul.f32 %v1462, %v1462
    %v1594 = vmul.f32 %v1463, %v1463
    %v1595 = vmul.f32 %v1464, %v1464
    %v1596 = vmul.f32 %v1465, %v1465
    %v1597 = vmul.f32 %v1466, %v1466
    %v1598 = vmul.f32 %v1467, %v1467
    %v1599 = vmul.f32 %v1468, %v1468
    %v1600 = vmul.f32 %v1469, %v1469
    %v1601 = vmul.f32 %v1470, %v1470
    %v1602 = vmul.f32 %v1471, %v1471
    %v1603 = vmul.f32 %v1472, %v1472
    %v1604 = vmul.f32 %v1473, %v1473
    %v1605 = vadd.f32 %v1589, %v1590
    %v1606 = vadd.f32 %v1605, %v1591
    %v1607 = vadd.f32 %v1606, %v1592
    %v1608 = vadd.f32 %v1607, %v1593
    %v1609 = vadd.f32 %v1608, %v1594
    %v1610 = vadd.f32 %v1609, %v1595
    %v1611 = vadd.f32 %v1610, %v1596
    %v1612 = vadd.f32 %v1611, %v1597
    %v1613 = vadd.f32 %v1612, %v1598
    %v1614 = vadd.f32 %v1613, %v1599
    %v1615 = vadd.f32 %v1614, %v1600
    %v1616 = vadd.f32 %v1615, %v1601
    %v1617 = vadd.f32 %v1616, %v1602
    %v1618 = vadd.f32 %v1617, %v1603
    %v1619 = vadd.f32 %v1618, %v1604
    %1620 = vadd.xlane.f32.xlu0 %v1619
    %v1621 = vpop.xlane.xlu0 %1620
    %v1622 = vrot.slane %v1621, 4
    %v1623 = vadd.f32 %v1621, %v1622
    %v1624 = vrot.slane %v1623, 2
    %v1625 = vadd.f32 %v1623, %v1624
    %v1626 = vrot.slane %v1625, 1
    %v1627 = vadd.f32 %v1625, %v1626
    %s1628 = vtos %v1627
    %s1629 = smul.f32 %s1548, 2.0
    %s1630 = ssub.f32 %s1588, %s1629
    %s1631 = sadd.f32 %s1630, 128.0
    %s1632 = ssub.f32 %s1628, %s1588
    %s1633 = smul.f32 %s1632, 0.005
    %s1634 = sadd.f32 %s1631, %s1633
    %v1635 = vstv %s1634
    %1636 = vst [vmem:[#allocation16] sm:$0x1] %v1635
    // Predicated region
    $region66: #{tpu_custom_call.1} parent=1 // pred_check
      _
    $region67: #{tpu_custom_call.1} parent=1 // pred_check_branch
      %1638 = sbr.rel (0) target = $region69
    $region68: #{tpu_custom_call.1} parent=1 // pred_region
      %s1640 = ssub.s32 128, 128
      %1641 = vsyncadd [#allocation4], %s1640
      %s1643 = sshll.u32 [#allocation13], 4
      %s1644 = int_to_ptr.vmem [resolvable:$true] %s1643
      %1646 = dma.vmem_to_hbm [thread:$0]  %s1644, 128, %s10, [#allocation4]
    $region69: #{tpu_custom_call.1} parent=1 // pred_fallthru
      _
    // Predicated region
    $region70: #{tpu_custom_call.1} parent=1 // pred_check
      _
    $region71: #{tpu_custom_call.1} parent=1 // pred_check_branch
      %1648 = sbr.rel (0) target = $region73
    $region72: #{tpu_custom_call.1} parent=1 // pred_region
      %s1650 = ssub.s32 128, 128
      %1651 = vsyncadd [#allocation15], %s1650
      %s1653 = sshll.u32 [#allocation14], 4
      %s1654 = int_to_ptr.vmem [resolvable:$true] %s1653
      %1656 = dma.vmem_to_hbm [thread:$0]  %s1654, 128, %s11, [#allocation15]
    $region73: #{tpu_custom_call.1} parent=1 // pred_fallthru
      _
    // Predicated region
    $region74: #{tpu_custom_call.1} parent=1 // pred_check
      _
    $region75: #{tpu_custom_call.1} parent=1 // pred_check_branch
      %1658 = sbr.rel (0) target = $region77
    $region76: #{tpu_custom_call.1} parent=1 // pred_region
      %s1660 = ssub.s32 16, 16
      %1661 = vsyncadd [#allocation15], %s1660
      %s1663 = sshll.u32 [#allocation16], 4
      %s1664 = int_to_ptr.vmem [resolvable:$true] %s1663
      %1666 = dma.vmem_to_hbm [thread:$0]  %s1664, 16, %s12, [#allocation15]
    $region77: #{tpu_custom_call.1} parent=1 // pred_fallthru
      _
    // Predicated region
    $region78: #{tpu_custom_call.1} parent=1 // pred_check
      _
    $region79: #{tpu_custom_call.1} parent=1 // pred_check_branch
      %1668 = sbr.rel (0) target = $region81
    $region80: #{tpu_custom_call.1} parent=1 // pred_region
      %1669 = dma.done [#allocation4], 128
    $region81: #{tpu_custom_call.1} parent=1 // pred_fallthru
      _
    // Predicated region
    $region82: #{tpu_custom_call.1} parent=1 // pred_check
      _
    $region83: #{tpu_custom_call.1} parent=1 // pred_check_branch
      %1671 = sbr.rel (0) target = $region85
    $region84: #{tpu_custom_call.1} parent=1 // pred_region
      %1672 = dma.done [#allocation15], 128
    $region85: #{tpu_custom_call.1} parent=1 // pred_fallthru
      _
    // Predicated region
    $region86: #{tpu_custom_call.1} parent=1 // pred_check
      _
    $region87: #{tpu_custom_call.1} parent=1 // pred_check_branch
      %1674 = sbr.rel (0) target = $region89
    $region88: #{tpu_custom_call.1} parent=1 // pred_region
      %1675 = dma.done [#allocation15], 16
    $region89: #{tpu_custom_call.1} parent=1 // pred_fallthru
      _
    %1676 = vsyncpa [#allocation3], 1
    %1677 = vsyncpa [#allocation6], 1
    %1678 = vsyncpa [#allocation9], 1
    %1679 = vsyncpa [#allocation12], 1
    %1680 = vsyncpa [#allocation4], 1
    %1681 = vsyncpa [#allocation15], 1

</llo_original>
